<compile_context>
chip_gen: v7x
topology: tpu7x:2x2x1
jax: 0.10.0
libtpu: 0.0.40
codegen_flags: <defaults>
</compile_context>

<pallas_src>
import functools

import jax
import jax.numpy as jnp
from jax import lax
from jax.experimental import pallas as pl
from jax.experimental.pallas import tpu as pltpu


def _round_up(v: int, m: int) -> int:
    return ((v + m - 1) // m) * m


# --------------------------------------------------------------------------
# Pallas kernel
# --------------------------------------------------------------------------
def make_stellar_kernel(n_hidden_layers: int,
                        n_graph_layers: int,
                        batch_norm: bool,
                        temperature: float,
                        n_true: int,
                        bn_eps: float = 1e-5):
    """Build the fused CustomStellarModel forward kernel.

    Kernel ref order:
      x, a_hat,
      w_in, b_in,
      (w_hid_i, b_hid_i)                * n_hidden_layers,
      (w_g_i, b_g_i[, gamma_i, beta_i]) * n_graph_layers,
      w_fc, b_fc,
      out_logits, out_feat
    """
    inv_t = 1.0 / float(temperature)
    inv_n = 1.0 / float(n_true)

    def kernel(*refs):
        it = iter(refs)
        x_ref = next(it)
        a_ref = next(it)
        w_in_ref = next(it)
        b_in_ref = next(it)
        hidden = [(next(it), next(it)) for _ in range(n_hidden_layers)]
        graph = []
        for _ in range(n_graph_layers):
            w_g = next(it)
            b_g = next(it)
            if batch_norm:
                gamma = next(it)
                beta = next(it)
            else:
                gamma = beta = None
            graph.append((w_g, b_g, gamma, beta))
        w_fc_ref = next(it)
        b_fc_ref = next(it)
        out_ref = next(it)
        out_feat_ref = next(it)

        n_pad = x_ref.shape[0]
        # Row-validity mask: padded rows must not contaminate the BatchNorm
        # batch statistics (they never propagate into valid rows through
        # A_hat because its padded columns are zero).
        row_ids = lax.broadcasted_iota(jnp.int32, (n_pad, 1), 0)
        row_mask = (row_ids < n_true).astype(jnp.float32)

        # ---- encoder: input linear + ReLU (bf16 MXU, f32 accumulate) ------
        feat = jnp.dot(x_ref[...], w_in_ref[...],
                       preferred_element_type=jnp.float32)
        feat = jnp.maximum(feat + b_in_ref[...], 0.0)

        # ---- encoder: hidden (Linear + ReLU) stack -------------------------
        for w_ref, b_ref in hidden:
            feat = jnp.dot(feat.astype(jnp.bfloat16), w_ref[...],
                           preferred_element_type=jnp.float32)
            feat = jnp.maximum(feat + b_ref[...], 0.0)

        # ---- encoder: GCN layers (+ optional fused BatchNorm1d) -----------
        a_hat = a_ref[...]
        out_feat = feat
        for w_ref, b_ref, gamma_ref, beta_ref in graph:
            xw = jnp.dot(out_feat.astype(jnp.bfloat16), w_ref[...],
                         preferred_element_type=jnp.float32)
            h = jnp.dot(a_hat, xw.astype(jnp.bfloat16),
                        preferred_element_type=jnp.float32)
            h = h + b_ref[...]
            if batch_norm:
                hm = h * row_mask                       # zero padded rows
                mean = jnp.sum(hm, axis=0, keepdims=True) * inv_n
                ex2 = jnp.sum(hm * hm, axis=0, keepdims=True) * inv_n
                var = jnp.maximum(ex2 - mean * mean, 0.0)   # biased var
                scale = gamma_ref[...] * lax.rsqrt(var + bn_eps)
                shift = beta_ref[...] - mean * scale
                h = h * scale + shift
            out_feat = h

        # ---- fc head: temperature-scaled linear ----------------------------
        logits = jnp.dot(out_feat.astype(jnp.bfloat16), w_fc_ref[...],
                         preferred_element_type=jnp.float32)
        logits = (logits + b_fc_ref[...]) * inv_t

        out_ref[...] = logits
        out_feat_ref[...] = out_feat

    return kernel


# --------------------------------------------------------------------------
# Wrapper (glue): pad to lane-dense shapes, cast matmul operands to bf16
# --------------------------------------------------------------------------
def custom_stellar_forward(x, a_hat, params,
                           n_hidden_layers, n_graph_layers,
                           batch_norm, temperature):
    n, input_dim = x.shape
    hid_dim = params["w_in"].shape[1]
    num_classes = params["w_fc"].shape[1]

    # lane-dense / sublane-aligned padded sizes
    n_pad = _round_up(n, 128)           # also the A_hat contraction dim
    in_pad = _round_up(input_dim, 128)
    hid_pad = _round_up(hid_dim, 128)
    cls_pad = _round_up(num_classes, 128)

    f32 = jnp.float32
    bf16 = jnp.bfloat16

    def pad2(a, rows, cols, dtype, fill=0.0):
        a = jnp.pad(a, ((0, rows - a.shape[0]), (0, cols - a.shape[1])),
                    constant_values=fill)
        return a.astype(dtype)

    operands = [
        pad2(x, n_pad, in_pad, bf16),
        pad2(a_hat, n_pad, n_pad, bf16),
        pad2(params["w_in"], in_pad, hid_pad, bf16),
        pad2(params["b_in"], 1, hid_pad, f32),
    ]
    for i in range(n_hidden_layers):
        operands += [pad2(params[f"w_hid_{i}"], hid_pad, hid_pad, bf16),
                     pad2(params[f"b_hid_{i}"], 1, hid_pad, f32)]
    for i in range(n_graph_layers):
        operands += [pad2(params[f"w_g_{i}"], hid_pad, hid_pad, bf16),
                     pad2(params[f"b_g_{i}"], 1, hid_pad, f32)]
        if batch_norm:
            operands += [pad2(params[f"bn_w_{i}"], 1, hid_pad, f32, fill=1.0),
                         pad2(params[f"bn_b_{i}"], 1, hid_pad, f32)]
    operands += [pad2(params["w_fc"], hid_pad, cls_pad, bf16),
                 pad2(params["b_fc"], 1, cls_pad, f32)]

    kernel = make_stellar_kernel(n_hidden_layers, n_graph_layers,
                                 batch_norm, temperature, n_true=n)

    # Scoped-VMEM hint sized to the actual resident footprint (with headroom),
    # floored at the 32 MiB default and capped at v7x's 64 MiB physical VMEM.
    out_bytes = n_pad * (cls_pad + hid_pad) * 4
    in_bytes = sum(int(o.size) * o.dtype.itemsize for o in operands)
    vmem_limit = int(max(32 << 20,
                         min(64 << 20, 2 * (in_bytes + out_bytes) + (8 << 20))))

    vmem = lambda: pl.BlockSpec(memory_space=pltpu.MemorySpace.VMEM)
    out_p, feat_p = pl.pallas_call(
        kernel,
        out_shape=(
            jax.ShapeDtypeStruct((n_pad, cls_pad), f32),
            jax.ShapeDtypeStruct((n_pad, hid_pad), f32),
        ),
        in_specs=[vmem() for _ in operands],
        out_specs=(vmem(), vmem()),
        compiler_params=pltpu.CompilerParams(vmem_limit_bytes=vmem_limit),
    )(*operands)

    # slice padded slabs back to the module's true output shapes
    return out_p[:n, :num_classes], feat_p[:n, :hid_dim]


# --------------------------------------------------------------------------
# Parameter init (deterministic, mimics PyTorch default Linear init bounds)
# --------------------------------------------------------------------------
def init_params(key, input_dim, hid_dim, num_classes,
                n_hidden_layers, n_graph_layers, batch_norm):
    params = {}

    def linear(key, fan_in, fan_out):
        k = 1.0 / jnp.sqrt(jnp.float32(fan_in))
        kw, kb = jax.random.split(key)
        w = jax.random.uniform(kw, (fan_in, fan_out), jnp.float32, -k, k)
        b = jax.random.uniform(kb, (1, fan_out), jnp.float32, -k, k)
        return w, b

    keys = jax.random.split(key, 3 + n_hidden_layers + n_graph_layers)
    ki = iter(keys)

    params["w_in"], params["b_in"] = linear(next(ki), input_dim, hid_dim)
    for i in range(n_hidden_layers):
        params[f"w_hid_{i}"], params[f"b_hid_{i}"] = linear(next(ki), hid_dim, hid_dim)
    for i in range(n_graph_layers):
        # GCNConv: glorot-ish weight, zero bias
        k = jnp.sqrt(6.0 / (hid_dim + hid_dim))
        params[f"w_g_{i}"] = jax.random.uniform(next(ki), (hid_dim, hid_dim),
                                                jnp.float32, -k, k)
        params[f"b_g_{i}"] = jnp.zeros((1, hid_dim), jnp.float32)
        if batch_norm:
            params[f"bn_w_{i}"] = jnp.ones((1, hid_dim), jnp.float32)
            params[f"bn_b_{i}"] = jnp.zeros((1, hid_dim), jnp.float32)
    params["w_fc"], params["b_fc"] = linear(next(ki), hid_dim, num_classes)
    return params


def build_gcn_adjacency(edge_index, n):
    """Dense GCN-normalized adjacency: D^-1/2 (A + I) D^-1/2 (with self loops)."""
    src, dst = edge_index
    a = jnp.zeros((n, n), jnp.float32)
    a = a.at[dst, src].set(1.0)                       # message src -> dst
    idx = jnp.arange(n)
    a = a.at[idx, idx].set(1.0)                       # self loops
    deg = jnp.sum(a, axis=1)
    d_inv_sqrt = jax.lax.rsqrt(jnp.maximum(deg, 1e-12))
    return a * d_inv_sqrt[:, None] * d_inv_sqrt[None, :]


# --------------------------------------------------------------------------
# Pure-JAX reference (mirrors the kernel math: bf16 matmuls, f32 accumulate)
# --------------------------------------------------------------------------
def reference_forward(x, a_hat, params, n_hidden_layers, n_graph_layers,
                      batch_norm, temperature, bn_eps=1e-5):
    bf = lambda a: a.astype(jnp.bfloat16)
    dot = lambda a, b: jnp.dot(bf(a), bf(b), preferred_element_type=jnp.float32)

    feat = jnp.maximum(dot(x, params["w_in"]) + params["b_in"], 0.0)
    for i in range(n_hidden_layers):
        feat = jnp.maximum(dot(feat, params[f"w_hid_{i}"]) + params[f"b_hid_{i}"], 0.0)
    out_feat = feat
    for i in range(n_graph_layers):
        xw = dot(out_feat, params[f"w_g_{i}"])
        h = dot(a_hat, xw) + params[f"b_g_{i}"]
        if batch_norm:
            mean = jnp.mean(h, axis=0, keepdims=True)
            var = jnp.maximum(jnp.mean(h * h, axis=0, keepdims=True) - mean * mean, 0.0)
            scale = params[f"bn_w_{i}"] * jax.lax.rsqrt(var + bn_eps)
            h = h * scale + (params[f"bn_b_{i}"] - mean * scale)
        out_feat = h
    logits = (dot(out_feat, params["w_fc"]) + params["b_fc"]) / temperature
    return logits, out_feat


# --------------------------------------------------------------------------
# Main
# --------------------------------------------------------------------------
if __name__ == "__main__":
    # Small synthetic graph, consistent with the STELLAR model signature.
    N = 64               # number of graph nodes
    INPUT_DIM = 32
    HID_DIM = 32
    NUM_CLASSES = 8
    N_HIDDEN_LAYERS = 1
    N_GRAPH_LAYERS = 2
    BATCH_NORM = True
    TEMPERATURE = 10.0
    N_EDGES = 256

    key = jax.random.PRNGKey(0)
    k_x, k_e, k_p = jax.random.split(key, 3)

    x = jax.random.normal(k_x, (N, INPUT_DIM), jnp.float32)
    edge_index = jax.random.randint(k_e, (2, N_EDGES), 0, N, jnp.int32)
    a_hat = build_gcn_adjacency(edge_index, N)

    params = init_params(k_p, INPUT_DIM, HID_DIM, NUM_CLASSES,
                         N_HIDDEN_LAYERS, N_GRAPH_LAYERS, BATCH_NORM)

    out, out_feat = custom_stellar_forward(
        x, a_hat, params, N_HIDDEN_LAYERS, N_GRAPH_LAYERS,
        BATCH_NORM, TEMPERATURE)
    jax.block_until_ready((out, out_feat))

    # sanity check against the plain-JAX reference (same bf16/f32 math)
    ref_out, ref_feat = reference_forward(
        x, a_hat, params, N_HIDDEN_LAYERS, N_GRAPH_LAYERS,
        BATCH_NORM, TEMPERATURE)
    assert out.shape == (N, NUM_CLASSES) and out_feat.shape == (N, HID_DIM)
    assert jnp.allclose(out, ref_out, atol=2e-2, rtol=2e-2), \
        float(jnp.max(jnp.abs(out - ref_out)))
    assert jnp.allclose(out_feat, ref_feat, atol=2e-2, rtol=2e-2), \
        float(jnp.max(jnp.abs(out_feat - ref_feat)))

    print("KERNEL_OK")
</pallas_src>

<mosaic_0001>
module attributes {stable_mosaic.version = 11 : i64} {
  func.func @kernel(%arg0: memref<128x128xbf16, #tpu.memory_space<vmem>>, %arg1: memref<128x128xbf16, #tpu.memory_space<vmem>>, %arg2: memref<128x128xbf16, #tpu.memory_space<vmem>>, %arg3: memref<1x128xf32, #tpu.memory_space<vmem>>, %arg4: memref<128x128xbf16, #tpu.memory_space<vmem>>, %arg5: memref<1x128xf32, #tpu.memory_space<vmem>>, %arg6: memref<128x128xbf16, #tpu.memory_space<vmem>>, %arg7: memref<1x128xf32, #tpu.memory_space<vmem>>, %arg8: memref<1x128xf32, #tpu.memory_space<vmem>>, %arg9: memref<1x128xf32, #tpu.memory_space<vmem>>, %arg10: memref<128x128xbf16, #tpu.memory_space<vmem>>, %arg11: memref<1x128xf32, #tpu.memory_space<vmem>>, %arg12: memref<1x128xf32, #tpu.memory_space<vmem>>, %arg13: memref<1x128xf32, #tpu.memory_space<vmem>>, %arg14: memref<128x128xbf16, #tpu.memory_space<vmem>>, %arg15: memref<1x128xf32, #tpu.memory_space<vmem>>, %arg16: memref<128x128xf32, #tpu.memory_space<vmem>>, %arg17: memref<128x128xf32, #tpu.memory_space<vmem>>) attributes {dimension_semantics = [], scalar_prefetch = 0 : i64, scratch_operands = 0 : i64, tpu.core_type = #tpu.core_type<tc>} {
    %0 = tpu.iota {dimensions = array<i32: 0>} : vector<128x1xi32>
    %c64_i32 = arith.constant 64 : i32
    %1 = vector.broadcast %c64_i32 : i32 to vector<128x1xi32>
    %2 = arith.cmpi slt, %0, %1 : vector<128x1xi32>
    %3 = arith.extui %2 : vector<128x1xi1> to vector<128x1xi32>
    %4 = arith.sitofp %3 : vector<128x1xi32> to vector<128x1xf32>
    %c0 = arith.constant 0 : index
    %c0_0 = arith.constant 0 : index
    %5 = vector.load %arg0[%c0, %c0_0] : memref<128x128xbf16, #tpu.memory_space<vmem>>, vector<128x128xbf16>
    %c0_1 = arith.constant 0 : index
    %c0_2 = arith.constant 0 : index
    %6 = vector.load %arg2[%c0_1, %c0_2] : memref<128x128xbf16, #tpu.memory_space<vmem>>, vector<128x128xbf16>
    %cst = arith.constant dense<0.000000e+00> : vector<128x128xf32>
    %7 = tpu.matmul %5, %6, %cst {dimension_numbers = #tpu.dot_dimension_numbers<[1], [0], [0], [1], [0, 0, 1, 1], [], []>} : vector<128x128xbf16>, vector<128x128xbf16>, vector<128x128xf32> -> vector<128x128xf32>
    %c0_3 = arith.constant 0 : index
    %c0_4 = arith.constant 0 : index
    %8 = vector.load %arg3[%c0_3, %c0_4] : memref<1x128xf32, #tpu.memory_space<vmem>>, vector<1x128xf32>
    %9 = vector.broadcast %8 : vector<1x128xf32> to vector<128x128xf32>
    %10 = arith.addf %7, %9 : vector<128x128xf32>
    %cst_5 = arith.constant 0.000000e+00 : f32
    %11 = vector.broadcast %cst_5 : f32 to vector<128x128xf32>
    %12 = arith.maximumf %10, %11 : vector<128x128xf32>
    %13 = arith.truncf %12 : vector<128x128xf32> to vector<128x128xbf16>
    %c0_6 = arith.constant 0 : index
    %c0_7 = arith.constant 0 : index
    %14 = vector.load %arg4[%c0_6, %c0_7] : memref<128x128xbf16, #tpu.memory_space<vmem>>, vector<128x128xbf16>
    %cst_8 = arith.constant dense<0.000000e+00> : vector<128x128xf32>
    %15 = tpu.matmul %13, %14, %cst_8 {dimension_numbers = #tpu.dot_dimension_numbers<[1], [0], [0], [1], [0, 0, 1, 1], [], []>} : vector<128x128xbf16>, vector<128x128xbf16>, vector<128x128xf32> -> vector<128x128xf32>
    %c0_9 = arith.constant 0 : index
    %c0_10 = arith.constant 0 : index
    %16 = vector.load %arg5[%c0_9, %c0_10] : memref<1x128xf32, #tpu.memory_space<vmem>>, vector<1x128xf32>
    %17 = vector.broadcast %16 : vector<1x128xf32> to vector<128x128xf32>
    %18 = arith.addf %15, %17 : vector<128x128xf32>
    %cst_11 = arith.constant 0.000000e+00 : f32
    %19 = vector.broadcast %cst_11 : f32 to vector<128x128xf32>
    %20 = arith.maximumf %18, %19 : vector<128x128xf32>
    %c0_12 = arith.constant 0 : index
    %c0_13 = arith.constant 0 : index
    %21 = vector.load %arg1[%c0_12, %c0_13] : memref<128x128xbf16, #tpu.memory_space<vmem>>, vector<128x128xbf16>
    %22 = arith.truncf %20 : vector<128x128xf32> to vector<128x128xbf16>
    %c0_14 = arith.constant 0 : index
    %c0_15 = arith.constant 0 : index
    %23 = vector.load %arg6[%c0_14, %c0_15] : memref<128x128xbf16, #tpu.memory_space<vmem>>, vector<128x128xbf16>
    %cst_16 = arith.constant dense<0.000000e+00> : vector<128x128xf32>
    %24 = tpu.matmul %22, %23, %cst_16 {dimension_numbers = #tpu.dot_dimension_numbers<[1], [0], [0], [1], [0, 0, 1, 1], [], []>} : vector<128x128xbf16>, vector<128x128xbf16>, vector<128x128xf32> -> vector<128x128xf32>
    %25 = arith.truncf %24 : vector<128x128xf32> to vector<128x128xbf16>
    %cst_17 = arith.constant dense<0.000000e+00> : vector<128x128xf32>
    %26 = tpu.matmul %21, %25, %cst_17 {dimension_numbers = #tpu.dot_dimension_numbers<[1], [0], [0], [1], [0, 0, 1, 1], [], []>} : vector<128x128xbf16>, vector<128x128xbf16>, vector<128x128xf32> -> vector<128x128xf32>
    %c0_18 = arith.constant 0 : index
    %c0_19 = arith.constant 0 : index
    %27 = vector.load %arg7[%c0_18, %c0_19] : memref<1x128xf32, #tpu.memory_space<vmem>>, vector<1x128xf32>
    %28 = vector.broadcast %27 : vector<1x128xf32> to vector<128x128xf32>
    %29 = arith.addf %26, %28 : vector<128x128xf32>
    %30 = vector.broadcast %4 : vector<128x1xf32> to vector<128x128xf32>
    %31 = arith.mulf %29, %30 : vector<128x128xf32>
    %cst_20 = arith.constant dense<0.000000e+00> : vector<128xf32>
    %32 = vector.multi_reduction <add>, %31, %cst_20 [0] : vector<128x128xf32> to vector<128xf32>
    %33 = vector.shape_cast %32 : vector<128xf32> to vector<1x128xf32>
    %cst_21 = arith.constant 1.562500e-02 : f32
    %34 = vector.broadcast %cst_21 : f32 to vector<1x128xf32>
    %35 = arith.mulf %33, %34 : vector<1x128xf32>
    %36 = arith.mulf %31, %31 : vector<128x128xf32>
    %cst_22 = arith.constant dense<0.000000e+00> : vector<128xf32>
    %37 = vector.multi_reduction <add>, %36, %cst_22 [0] : vector<128x128xf32> to vector<128xf32>
    %38 = vector.shape_cast %37 : vector<128xf32> to vector<1x128xf32>
    %cst_23 = arith.constant 1.562500e-02 : f32
    %39 = vector.broadcast %cst_23 : f32 to vector<1x128xf32>
    %40 = arith.mulf %38, %39 : vector<1x128xf32>
    %41 = arith.mulf %35, %35 : vector<1x128xf32>
    %42 = arith.subf %40, %41 : vector<1x128xf32>
    %cst_24 = arith.constant 0.000000e+00 : f32
    %43 = vector.broadcast %cst_24 : f32 to vector<1x128xf32>
    %44 = arith.maximumf %42, %43 : vector<1x128xf32>
    %c0_25 = arith.constant 0 : index
    %c0_26 = arith.constant 0 : index
    %45 = vector.load %arg8[%c0_25, %c0_26] : memref<1x128xf32, #tpu.memory_space<vmem>>, vector<1x128xf32>
    %cst_27 = arith.constant 9.99999974E-6 : f32
    %46 = vector.broadcast %cst_27 : f32 to vector<1x128xf32>
    %47 = arith.addf %44, %46 : vector<1x128xf32>
    %48 = math.rsqrt %47 : vector<1x128xf32>
    %49 = arith.mulf %45, %48 : vector<1x128xf32>
    %c0_28 = arith.constant 0 : index
    %c0_29 = arith.constant 0 : index
    %50 = vector.load %arg9[%c0_28, %c0_29] : memref<1x128xf32, #tpu.memory_space<vmem>>, vector<1x128xf32>
    %51 = arith.mulf %35, %49 : vector<1x128xf32>
    %52 = arith.subf %50, %51 : vector<1x128xf32>
    %53 = vector.broadcast %49 : vector<1x128xf32> to vector<128x128xf32>
    %54 = arith.mulf %29, %53 : vector<128x128xf32>
    %55 = vector.broadcast %52 : vector<1x128xf32> to vector<128x128xf32>
    %56 = arith.addf %54, %55 : vector<128x128xf32>
    %57 = arith.truncf %56 : vector<128x128xf32> to vector<128x128xbf16>
    %c0_30 = arith.constant 0 : index
    %c0_31 = arith.constant 0 : index
    %58 = vector.load %arg10[%c0_30, %c0_31] : memref<128x128xbf16, #tpu.memory_space<vmem>>, vector<128x128xbf16>
    %cst_32 = arith.constant dense<0.000000e+00> : vector<128x128xf32>
    %59 = tpu.matmul %57, %58, %cst_32 {dimension_numbers = #tpu.dot_dimension_numbers<[1], [0], [0], [1], [0, 0, 1, 1], [], []>} : vector<128x128xbf16>, vector<128x128xbf16>, vector<128x128xf32> -> vector<128x128xf32>
    %60 = arith.truncf %59 : vector<128x128xf32> to vector<128x128xbf16>
    %cst_33 = arith.constant dense<0.000000e+00> : vector<128x128xf32>
    %61 = tpu.matmul %21, %60, %cst_33 {dimension_numbers = #tpu.dot_dimension_numbers<[1], [0], [0], [1], [0, 0, 1, 1], [], []>} : vector<128x128xbf16>, vector<128x128xbf16>, vector<128x128xf32> -> vector<128x128xf32>
    %c0_34 = arith.constant 0 : index
    %c0_35 = arith.constant 0 : index
    %62 = vector.load %arg11[%c0_34, %c0_35] : memref<1x128xf32, #tpu.memory_space<vmem>>, vector<1x128xf32>
    %63 = vector.broadcast %62 : vector<1x128xf32> to vector<128x128xf32>
    %64 = arith.addf %61, %63 : vector<128x128xf32>
    %65 = vector.broadcast %4 : vector<128x1xf32> to vector<128x128xf32>
    %66 = arith.mulf %64, %65 : vector<128x128xf32>
    %cst_36 = arith.constant dense<0.000000e+00> : vector<128xf32>
    %67 = vector.multi_reduction <add>, %66, %cst_36 [0] : vector<128x128xf32> to vector<128xf32>
    %68 = vector.shape_cast %67 : vector<128xf32> to vector<1x128xf32>
    %cst_37 = arith.constant 1.562500e-02 : f32
    %69 = vector.broadcast %cst_37 : f32 to vector<1x128xf32>
    %70 = arith.mulf %68, %69 : vector<1x128xf32>
    %71 = arith.mulf %66, %66 : vector<128x128xf32>
    %cst_38 = arith.constant dense<0.000000e+00> : vector<128xf32>
    %72 = vector.multi_reduction <add>, %71, %cst_38 [0] : vector<128x128xf32> to vector<128xf32>
    %73 = vector.shape_cast %72 : vector<128xf32> to vector<1x128xf32>
    %cst_39 = arith.constant 1.562500e-02 : f32
    %74 = vector.broadcast %cst_39 : f32 to vector<1x128xf32>
    %75 = arith.mulf %73, %74 : vector<1x128xf32>
    %76 = arith.mulf %70, %70 : vector<1x128xf32>
    %77 = arith.subf %75, %76 : vector<1x128xf32>
    %cst_40 = arith.constant 0.000000e+00 : f32
    %78 = vector.broadcast %cst_40 : f32 to vector<1x128xf32>
    %79 = arith.maximumf %77, %78 : vector<1x128xf32>
    %c0_41 = arith.constant 0 : index
    %c0_42 = arith.constant 0 : index
    %80 = vector.load %arg12[%c0_41, %c0_42] : memref<1x128xf32, #tpu.memory_space<vmem>>, vector<1x128xf32>
    %cst_43 = arith.constant 9.99999974E-6 : f32
    %81 = vector.broadcast %cst_43 : f32 to vector<1x128xf32>
    %82 = arith.addf %79, %81 : vector<1x128xf32>
    %83 = math.rsqrt %82 : vector<1x128xf32>
    %84 = arith.mulf %80, %83 : vector<1x128xf32>
    %c0_44 = arith.constant 0 : index
    %c0_45 = arith.constant 0 : index
    %85 = vector.load %arg13[%c0_44, %c0_45] : memref<1x128xf32, #tpu.memory_space<vmem>>, vector<1x128xf32>
    %86 = arith.mulf %70, %84 : vector<1x128xf32>
    %87 = arith.subf %85, %86 : vector<1x128xf32>
    %88 = vector.broadcast %84 : vector<1x128xf32> to vector<128x128xf32>
    %89 = arith.mulf %64, %88 : vector<128x128xf32>
    %90 = vector.broadcast %87 : vector<1x128xf32> to vector<128x128xf32>
    %91 = arith.addf %89, %90 : vector<128x128xf32>
    %92 = arith.truncf %91 : vector<128x128xf32> to vector<128x128xbf16>
    %c0_46 = arith.constant 0 : index
    %c0_47 = arith.constant 0 : index
    %93 = vector.load %arg14[%c0_46, %c0_47] : memref<128x128xbf16, #tpu.memory_space<vmem>>, vector<128x128xbf16>
    %cst_48 = arith.constant dense<0.000000e+00> : vector<128x128xf32>
    %94 = tpu.matmul %92, %93, %cst_48 {dimension_numbers = #tpu.dot_dimension_numbers<[1], [0], [0], [1], [0, 0, 1, 1], [], []>} : vector<128x128xbf16>, vector<128x128xbf16>, vector<128x128xf32> -> vector<128x128xf32>
    %c0_49 = arith.constant 0 : index
    %c0_50 = arith.constant 0 : index
    %95 = vector.load %arg15[%c0_49, %c0_50] : memref<1x128xf32, #tpu.memory_space<vmem>>, vector<1x128xf32>
    %96 = vector.broadcast %95 : vector<1x128xf32> to vector<128x128xf32>
    %97 = arith.addf %94, %96 : vector<128x128xf32>
    %cst_51 = arith.constant 1.000000e-01 : f32
    %98 = vector.broadcast %cst_51 : f32 to vector<128x128xf32>
    %99 = arith.mulf %97, %98 : vector<128x128xf32>
    %c0_52 = arith.constant 0 : index
    %c0_53 = arith.constant 0 : index
    %100 = vector.load %arg16[%c0_52, %c0_53] : memref<128x128xf32, #tpu.memory_space<vmem>>, vector<128x128xf32>
    tpu.vector_store %arg16[%c0_52, %c0_53], %99 {strides = array<i32>} : memref<128x128xf32, #tpu.memory_space<vmem>>, vector<128x128xf32>,
    %c0_54 = arith.constant 0 : index
    %c0_55 = arith.constant 0 : index
    %101 = vector.load %arg17[%c0_54, %c0_55] : memref<128x128xf32, #tpu.memory_space<vmem>>, vector<128x128xf32>
    tpu.vector_store %arg17[%c0_54, %c0_55], %91 {strides = array<i32>} : memref<128x128xf32, #tpu.memory_space<vmem>>, vector<128x128xf32>,
    return
  }
}

</mosaic_0001>

<llo_original>
// kernel: tpu_custom_call.1
$region0: #{tpu_custom_call.1}
  #allocation0 [shape = 'u32[]', space=smem, size = 0x4, offset = 0x4, fixed_abs, tag = 'smem constant byte address 0x4 - core index']
  #allocation1 [shape = 'u32[144,128]{1,0:T(1,128)}', space=vmem, size = 0x12000, scoped, tag = 'internal scratch']
  %s0 = inlined_call_operand.hbm [shape: bf16[128,128], index: 0, kind: input, shape index: {}]
  %s1 = inlined_call_operand.hbm [shape: bf16[128,128], index: 1, kind: input, shape index: {}]
  %s2 = inlined_call_operand.hbm [shape: bf16[128,128], index: 2, kind: input, shape index: {}]
  %s3 = inlined_call_operand.vmem [shape: f32[1,128], index: 3, kind: input, shape index: {}]
  %s4 = inlined_call_operand.hbm [shape: bf16[128,128], index: 4, kind: input, shape index: {}]
  %s5 = inlined_call_operand.vmem [shape: f32[1,128], index: 5, kind: input, shape index: {}]
  %s6 = inlined_call_operand.hbm [shape: bf16[128,128], index: 6, kind: input, shape index: {}]
  %s7 = inlined_call_operand.vmem [shape: f32[1,128], index: 7, kind: input, shape index: {}]
  %s8 = inlined_call_operand.vmem [shape: f32[1,128], index: 8, kind: input, shape index: {}]
  %s9 = inlined_call_operand.vmem [shape: f32[1,128], index: 9, kind: input, shape index: {}]
  %s10 = inlined_call_operand.hbm [shape: bf16[128,128], index: 10, kind: input, shape index: {}]
  %s11 = inlined_call_operand.vmem [shape: f32[1,128], index: 11, kind: input, shape index: {}]
  %s12 = inlined_call_operand.vmem [shape: f32[1,128], index: 12, kind: input, shape index: {}]
  %s13 = inlined_call_operand.vmem [shape: f32[1,128], index: 13, kind: input, shape index: {}]
  %s14 = inlined_call_operand.hbm [shape: bf16[128,128], index: 14, kind: input, shape index: {}]
  %s15 = inlined_call_operand.vmem [shape: f32[1,128], index: 15, kind: input, shape index: {}]
  %s16 = inlined_call_operand.hbm [shape: f32[128,128], index: 16, kind: output, shape index: {0}]
  %s17 = inlined_call_operand.hbm [shape: f32[128,128], index: 17, kind: output, shape index: {1}]
  %18 = xla_tuple %s16, %s17
  %s19 = sld [smem:[#allocation0]]
  $region110: #{tpu_custom_call.1} parent=0
    _
  %s21 = ssub.s32 1, %s19
  %s22 = scalar_select 0, %s21, %s19
  $region1: #{tpu_custom_call.1} parent=0
    #allocation2 [shape = 'u8[32768]{0}', space=vmem, size = 0x8000, scoped, tag = 'input window, operand 0, single buffered']
    #allocation3 [shape = 's32[1]{0}', space=sflag, size = 0x4, scoped, tag = 'scoped memory for tpu_custom_call.1']
    #allocation4 [shape = 's32[1]{0}', space=sflag, size = 0x4, scoped, tag = 'scoped memory for tpu_custom_call.1']
    #allocation5 [shape = 'u8[32768]{0}', space=vmem, size = 0x8000, scoped, tag = 'input window, operand 1, single buffered']
    #allocation6 [shape = 's32[1]{0}', space=sflag, size = 0x4, scoped, tag = 'scoped memory for tpu_custom_call.1']
    #allocation7 [shape = 'u8[32768]{0}', space=vmem, size = 0x8000, scoped, tag = 'input window, operand 2, single buffered']
    #allocation8 [shape = 'u8[32768]{0}', space=vmem, size = 0x8000, scoped, tag = 'input window, operand 4, single buffered']
    #allocation9 [shape = 's32[1]{0}', space=sflag, size = 0x4, scoped, tag = 'scoped memory for tpu_custom_call.1']
    #allocation10 [shape = 'u8[32768]{0}', space=vmem, size = 0x8000, scoped, tag = 'input window, operand 6, single buffered']
    #allocation11 [shape = 'u8[32768]{0}', space=vmem, size = 0x8000, scoped, tag = 'input window, operand 10, single buffered']
    #allocation12 [shape = 's32[1]{0}', space=sflag, size = 0x4, scoped, tag = 'scoped memory for tpu_custom_call.1']
    #allocation13 [shape = 'u8[32768]{0}', space=vmem, size = 0x8000, scoped, tag = 'input window, operand 14, single buffered']
    #allocation14 [shape = 'u8[65536]{0}', space=vmem, size = 0x10000, scoped, tag = 'output window, operand 0, single buffered']
    #allocation15 [shape = 'u8[65536]{0}', space=vmem, size = 0x10000, scoped, tag = 'output window, operand 1, single buffered']
    #allocation16 [shape = 's32[1]{0}', space=sflag, size = 0x4, scoped, tag = 'scoped memory for tpu_custom_call.1']
    %23 = vsyncpa [#allocation3], 0
    %24 = vsyncpa [#allocation6], 0
    %25 = vsyncpa [#allocation9], 0
    %26 = vsyncpa [#allocation12], 0
    %27 = vsyncpa [#allocation4], 0
    %28 = vsyncpa [#allocation16], 0
    // Predicated region
    $region2: #{tpu_custom_call.1} parent=1 // pred_check
      _
    $region3: #{tpu_custom_call.1} parent=1 // pred_check_branch
      %30 = sbr.rel (0) target = $region5
    $region4: #{tpu_custom_call.1} parent=1 // pred_region
      %s32 = ssub.s32 1024, 1024
      %33 = vsyncadd [#allocation3], %s32
      %s34 = sshll.u32 [#allocation2], 4
      %s35 = int_to_ptr.vmem [resolvable:$true] %s34
      %40 = dma.hbm_to_vmem [thread:$0]  %s0, 1024, %s35, [#allocation3], 64, 64, 4
    $region5: #{tpu_custom_call.1} parent=1 // pred_fallthru
      _
    // Predicated region
    $region6: #{tpu_custom_call.1} parent=1 // pred_check
      _
    $region7: #{tpu_custom_call.1} parent=1 // pred_check_branch
      %42 = sbr.rel (0) target = $region9
    $region8: #{tpu_custom_call.1} parent=1 // pred_region
      %s44 = ssub.s32 1024, 1024
      %45 = vsyncadd [#allocation6], %s44
      %s46 = sshll.u32 [#allocation5], 4
      %s47 = int_to_ptr.vmem [resolvable:$true] %s46
      %52 = dma.hbm_to_vmem [thread:$0]  %s1, 1024, %s47, [#allocation6], 64, 64, 4
    $region9: #{tpu_custom_call.1} parent=1 // pred_fallthru
      _
    // Predicated region
    $region10: #{tpu_custom_call.1} parent=1 // pred_check
      _
    $region11: #{tpu_custom_call.1} parent=1 // pred_check_branch
      %54 = sbr.rel (0) target = $region13
    $region12: #{tpu_custom_call.1} parent=1 // pred_region
      %s56 = ssub.s32 1024, 1024
      %57 = vsyncadd [#allocation6], %s56
      %s58 = sshll.u32 [#allocation7], 4
      %s59 = int_to_ptr.vmem [resolvable:$true] %s58
      %64 = dma.hbm_to_vmem [thread:$0]  %s2, 1024, %s59, [#allocation6], 64, 64, 4
    $region13: #{tpu_custom_call.1} parent=1 // pred_fallthru
      _
    // Predicated region
    $region14: #{tpu_custom_call.1} parent=1 // pred_check
      _
    $region15: #{tpu_custom_call.1} parent=1 // pred_check_branch
      %66 = sbr.rel (0) target = $region17
    $region16: #{tpu_custom_call.1} parent=1 // pred_region
      _
    $region17: #{tpu_custom_call.1} parent=1 // pred_fallthru
      _
    // Predicated region
    $region18: #{tpu_custom_call.1} parent=1 // pred_check
      _
    $region19: #{tpu_custom_call.1} parent=1 // pred_check_branch
      %68 = sbr.rel (0) target = $region21
    $region20: #{tpu_custom_call.1} parent=1 // pred_region
      %s70 = ssub.s32 1024, 1024
      %71 = vsyncadd [#allocation9], %s70
      %s72 = sshll.u32 [#allocation8], 4
      %s73 = int_to_ptr.vmem [resolvable:$true] %s72
      %78 = dma.hbm_to_vmem [thread:$0]  %s4, 1024, %s73, [#allocation9], 64, 64, 4
    $region21: #{tpu_custom_call.1} parent=1 // pred_fallthru
      _
    // Predicated region
    $region22: #{tpu_custom_call.1} parent=1 // pred_check
      _
    $region23: #{tpu_custom_call.1} parent=1 // pred_check_branch
      %80 = sbr.rel (0) target = $region25
    $region24: #{tpu_custom_call.1} parent=1 // pred_region
      _
    $region25: #{tpu_custom_call.1} parent=1 // pred_fallthru
      _
    // Predicated region
    $region26: #{tpu_custom_call.1} parent=1 // pred_check
      _
    $region27: #{tpu_custom_call.1} parent=1 // pred_check_branch
      %82 = sbr.rel (0) target = $region29
    $region28: #{tpu_custom_call.1} parent=1 // pred_region
      %s84 = ssub.s32 1024, 1024
      %85 = vsyncadd [#allocation9], %s84
      %s86 = sshll.u32 [#allocation10], 4
      %s87 = int_to_ptr.vmem [resolvable:$true] %s86
      %92 = dma.hbm_to_vmem [thread:$0]  %s6, 1024, %s87, [#allocation9], 64, 64, 4
    $region29: #{tpu_custom_call.1} parent=1 // pred_fallthru
      _
    // Predicated region
    $region30: #{tpu_custom_call.1} parent=1 // pred_check
      _
    $region31: #{tpu_custom_call.1} parent=1 // pred_check_branch
      %94 = sbr.rel (0) target = $region33
    $region32: #{tpu_custom_call.1} parent=1 // pred_region
      _
    $region33: #{tpu_custom_call.1} parent=1 // pred_fallthru
      _
    // Predicated region
    $region34: #{tpu_custom_call.1} parent=1 // pred_check
      _
    $region35: #{tpu_custom_call.1} parent=1 // pred_check_branch
      %96 = sbr.rel (0) target = $region37
    $region36: #{tpu_custom_call.1} parent=1 // pred_region
      _
    $region37: #{tpu_custom_call.1} parent=1 // pred_fallthru
      _
    // Predicated region
    $region38: #{tpu_custom_call.1} parent=1 // pred_check
      _
    $region39: #{tpu_custom_call.1} parent=1 // pred_check_branch
      %98 = sbr.rel (0) target = $region41
    $region40: #{tpu_custom_call.1} parent=1 // pred_region
      _
    $region41: #{tpu_custom_call.1} parent=1 // pred_fallthru
      _
    // Predicated region
    $region42: #{tpu_custom_call.1} parent=1 // pred_check
      _
    $region43: #{tpu_custom_call.1} parent=1 // pred_check_branch
      %100 = sbr.rel (0) target = $region45
    $region44: #{tpu_custom_call.1} parent=1 // pred_region
      %s102 = ssub.s32 1024, 1024
      %103 = vsyncadd [#allocation12], %s102
      %s104 = sshll.u32 [#allocation11], 4
      %s105 = int_to_ptr.vmem [resolvable:$true] %s104
      %110 = dma.hbm_to_vmem [thread:$0]  %s10, 1024, %s105, [#allocation12], 64, 64, 4
    $region45: #{tpu_custom_call.1} parent=1 // pred_fallthru
      _
    // Predicated region
    $region46: #{tpu_custom_call.1} parent=1 // pred_check
      _
    $region47: #{tpu_custom_call.1} parent=1 // pred_check_branch
      %112 = sbr.rel (0) target = $region49
    $region48: #{tpu_custom_call.1} parent=1 // pred_region
      _
    $region49: #{tpu_custom_call.1} parent=1 // pred_fallthru
      _
    // Predicated region
    $region50: #{tpu_custom_call.1} parent=1 // pred_check
      _
    $region51: #{tpu_custom_call.1} parent=1 // pred_check_branch
      %114 = sbr.rel (0) target = $region53
    $region52: #{tpu_custom_call.1} parent=1 // pred_region
      _
    $region53: #{tpu_custom_call.1} parent=1 // pred_fallthru
      _
    // Predicated region
    $region54: #{tpu_custom_call.1} parent=1 // pred_check
      _
    $region55: #{tpu_custom_call.1} parent=1 // pred_check_branch
      %116 = sbr.rel (0) target = $region57
    $region56: #{tpu_custom_call.1} parent=1 // pred_region
      _
    $region57: #{tpu_custom_call.1} parent=1 // pred_fallthru
      _
    // Predicated region
    $region58: #{tpu_custom_call.1} parent=1 // pred_check
      _
    $region59: #{tpu_custom_call.1} parent=1 // pred_check_branch
      %118 = sbr.rel (0) target = $region61
    $region60: #{tpu_custom_call.1} parent=1 // pred_region
      %s120 = ssub.s32 1024, 1024
      %121 = vsyncadd [#allocation12], %s120
      %s122 = sshll.u32 [#allocation13], 4
      %s123 = int_to_ptr.vmem [resolvable:$true] %s122
      %128 = dma.hbm_to_vmem [thread:$0]  %s14, 1024, %s123, [#allocation12], 64, 64, 4
    $region61: #{tpu_custom_call.1} parent=1 // pred_fallthru
      _
    // Predicated region
    $region62: #{tpu_custom_call.1} parent=1 // pred_check
      _
    $region63: #{tpu_custom_call.1} parent=1 // pred_check_branch
      %130 = sbr.rel (0) target = $region65
    $region64: #{tpu_custom_call.1} parent=1 // pred_region
      _
    $region65: #{tpu_custom_call.1} parent=1 // pred_fallthru
      _
    // Predicated region
    $region66: #{tpu_custom_call.1} parent=1 // pred_check
      _
    $region67: #{tpu_custom_call.1} parent=1 // pred_check_branch
      %132 = sbr.rel (0) target = $region69
    $region68: #{tpu_custom_call.1} parent=1 // pred_region
      %133 = dma.done [#allocation3], 1024
    $region69: #{tpu_custom_call.1} parent=1 // pred_fallthru
      _
    // Predicated region
    $region70: #{tpu_custom_call.1} parent=1 // pred_check
      _
    $region71: #{tpu_custom_call.1} parent=1 // pred_check_branch
      %135 = sbr.rel (0) target = $region73
    $region72: #{tpu_custom_call.1} parent=1 // pred_region
      %136 = dma.done [#allocation6], 1024
    $region73: #{tpu_custom_call.1} parent=1 // pred_fallthru
      _
    // Predicated region
    $region74: #{tpu_custom_call.1} parent=1 // pred_check
      _
    $region75: #{tpu_custom_call.1} parent=1 // pred_check_branch
      %138 = sbr.rel (0) target = $region77
    $region76: #{tpu_custom_call.1} parent=1 // pred_region
      %139 = dma.done [#allocation6], 1024
    $region77: #{tpu_custom_call.1} parent=1 // pred_fallthru
      _
    // Predicated region
    $region78: #{tpu_custom_call.1} parent=1 // pred_check
      _
    $region79: #{tpu_custom_call.1} parent=1 // pred_check_branch
      %141 = sbr.rel (0) target = $region81
    $region80: #{tpu_custom_call.1} parent=1 // pred_region
      %142 = dma.done [#allocation9], 1024
    $region81: #{tpu_custom_call.1} parent=1 // pred_fallthru
      _
    // Predicated region
    $region82: #{tpu_custom_call.1} parent=1 // pred_check
      _
    $region83: #{tpu_custom_call.1} parent=1 // pred_check_branch
      %144 = sbr.rel (0) target = $region85
    $region84: #{tpu_custom_call.1} parent=1 // pred_region
      %145 = dma.done [#allocation9], 1024
    $region85: #{tpu_custom_call.1} parent=1 // pred_fallthru
      _
    // Predicated region
    $region86: #{tpu_custom_call.1} parent=1 // pred_check
      _
    $region87: #{tpu_custom_call.1} parent=1 // pred_check_branch
      %147 = sbr.rel (0) target = $region89
    $region88: #{tpu_custom_call.1} parent=1 // pred_region
      %148 = dma.done [#allocation12], 1024
    $region89: #{tpu_custom_call.1} parent=1 // pred_fallthru
      _
    // Predicated region
    $region90: #{tpu_custom_call.1} parent=1 // pred_check
      _
    $region91: #{tpu_custom_call.1} parent=1 // pred_check_branch
      %150 = sbr.rel (0) target = $region93
    $region92: #{tpu_custom_call.1} parent=1 // pred_region
      %151 = dma.done [#allocation12], 1024
    $region93: #{tpu_custom_call.1} parent=1 // pred_fallthru
      _
    %v153 = vlaneseq
    %v154 = vshrl.u32 %v153, 7
    %v155 = vadd.s32 %v154, 8
    %v156 = vadd.s32 %v154, 16
    %v157 = vadd.s32 %v154, 24
    %v158 = vadd.s32 %v154, 32
    %v159 = vadd.s32 %v154, 40
    %v160 = vadd.s32 %v154, 48
    %v161 = vadd.s32 %v154, 56
    %v162 = vadd.s32 %v154, 64
    %v163 = vadd.s32 %v154, 72
    %v164 = vadd.s32 %v154, 80
    %v165 = vadd.s32 %v154, 88
    %v166 = vadd.s32 %v154, 96
    %v167 = vadd.s32 %v154, 104
    %v168 = vadd.s32 %v154, 112
    %v169 = vadd.s32 %v154, 120
    %vm170 = vcmp.lt.s32.totalorder %v154, 64
    %vm171 = vcmp.lt.s32.totalorder %v155, 64
    %vm172 = vcmp.lt.s32.totalorder %v156, 64
    %vm173 = vcmp.lt.s32.totalorder %v157, 64
    %vm174 = vcmp.lt.s32.totalorder %v158, 64
    %vm175 = vcmp.lt.s32.totalorder %v159, 64
    %vm176 = vcmp.lt.s32.totalorder %v160, 64
    %vm177 = vcmp.lt.s32.totalorder %v161, 64
    %vm178 = vcmp.lt.s32.totalorder %v162, 64
    %vm179 = vcmp.lt.s32.totalorder %v163, 64
    %vm180 = vcmp.lt.s32.totalorder %v164, 64
    %vm181 = vcmp.lt.s32.totalorder %v165, 64
    %vm182 = vcmp.lt.s32.totalorder %v166, 64
    %vm183 = vcmp.lt.s32.totalorder %v167, 64
    %vm184 = vcmp.lt.s32.totalorder %v168, 64
    %vm185 = vcmp.lt.s32.totalorder %v169, 64
    %v186 = vsel %vm170, 1, 0
    %v187 = vsel %vm171, 1, 0
    %v188 = vsel %vm172, 1, 0
    %v189 = vsel %vm173, 1, 0
    %v190 = vsel %vm174, 1, 0
    %v191 = vsel %vm175, 1, 0
    %v192 = vsel %vm176, 1, 0
    %v193 = vsel %vm177, 1, 0
    %v194 = vsel %vm178, 1, 0
    %v195 = vsel %vm179, 1, 0
    %v196 = vsel %vm180, 1, 0
    %v197 = vsel %vm181, 1, 0
    %v198 = vsel %vm182, 1, 0
    %v199 = vsel %vm183, 1, 0
    %v200 = vsel %vm184, 1, 0
    %v201 = vsel %vm185, 1, 0
    %v202 = vcvt.s32.f32 %v186
    %v203 = vcvt.s32.f32 %v187
    %v204 = vcvt.s32.f32 %v188
    %v205 = vcvt.s32.f32 %v189
    %v206 = vcvt.s32.f32 %v190
    %v207 = vcvt.s32.f32 %v191
    %v208 = vcvt.s32.f32 %v192
    %v209 = vcvt.s32.f32 %v193
    %v210 = vcvt.s32.f32 %v194
    %v211 = vcvt.s32.f32 %v195
    %v212 = vcvt.s32.f32 %v196
    %v213 = vcvt.s32.f32 %v197
    %v214 = vcvt.s32.f32 %v198
    %v215 = vcvt.s32.f32 %v199
    %v216 = vcvt.s32.f32 %v200
    %v217 = vcvt.s32.f32 %v201
    %v218 = vld [vmem:[#allocation2] sm:$0xf]
    %v219 = vld [vmem:[#allocation2 + $0x4] sm:$0xf]
    %v220 = vld [vmem:[#allocation2 + $0x8] sm:$0xf]
    %v221 = vld [vmem:[#allocation2 + $0xc] sm:$0xf]
    %v222 = vld [vmem:[#allocation2 + $0x10] sm:$0xf]
    %v223 = vld [vmem:[#allocation2 + $0x14] sm:$0xf]
    %v224 = vld [vmem:[#allocation2 + $0x18] sm:$0xf]
    %v225 = vld [vmem:[#allocation2 + $0x1c] sm:$0xf]
    %v226 = vld [vmem:[#allocation2 + $0x20] sm:$0xf]
    %v227 = vld [vmem:[#allocation2 + $0x24] sm:$0xf]
    %v228 = vld [vmem:[#allocation2 + $0x28] sm:$0xf]
    %v229 = vld [vmem:[#allocation2 + $0x2c] sm:$0xf]
    %v230 = vld [vmem:[#allocation2 + $0x30] sm:$0xf]
    %v231 = vld [vmem:[#allocation2 + $0x34] sm:$0xf]
    %v232 = vld [vmem:[#allocation2 + $0x38] sm:$0xf]
    %v233 = vld [vmem:[#allocation2 + $0x3c] sm:$0xf]
    %v234 = vld [vmem:[#allocation7] sm:$0xf]
    %v235 = vld [vmem:[#allocation7 + $0x4] sm:$0xf]
    %v236 = vld [vmem:[#allocation7 + $0x8] sm:$0xf]
    %v237 = vld [vmem:[#allocation7 + $0xc] sm:$0xf]
    %v238 = vld [vmem:[#allocation7 + $0x10] sm:$0xf]
    %v239 = vld [vmem:[#allocation7 + $0x14] sm:$0xf]
    %v240 = vld [vmem:[#allocation7 + $0x18] sm:$0xf]
    %v241 = vld [vmem:[#allocation7 + $0x1c] sm:$0xf]
    %v242 = vld [vmem:[#allocation7 + $0x20] sm:$0xf]
    %v243 = vld [vmem:[#allocation7 + $0x24] sm:$0xf]
    %v244 = vld [vmem:[#allocation7 + $0x28] sm:$0xf]
    %v245 = vld [vmem:[#allocation7 + $0x2c] sm:$0xf]
    %v246 = vld [vmem:[#allocation7 + $0x30] sm:$0xf]
    %v247 = vld [vmem:[#allocation7 + $0x34] sm:$0xf]
    %v248 = vld [vmem:[#allocation7 + $0x38] sm:$0xf]
    %v249 = vld [vmem:[#allocation7 + $0x3c] sm:$0xf]
    %v250 = vld [vmem:[%s3] sm:$0x1]
    %v252 = vlaneseq
    %v253 = vshrl.u32 %v252, 7
    %v254 = vsub.s32 0, %v253
    %v255 = vrot.slane %v250, %v254
    %v273 = vunpack.c.l.b16 %v218
    %v274 = vunpack.c.l.b16 %v219
    %v275 = vunpack.c.l.b16 %v220
    %v276 = vunpack.c.l.b16 %v221
    %v277 = vunpack.c.l.b16 %v222
    %v278 = vunpack.c.l.b16 %v223
    %v279 = vunpack.c.l.b16 %v224
    %v280 = vunpack.c.l.b16 %v225
    %v281 = vunpack.c.l.b16 %v226
    %v282 = vunpack.c.l.b16 %v227
    %v283 = vunpack.c.l.b16 %v228
    %v284 = vunpack.c.l.b16 %v229
    %v285 = vunpack.c.l.b16 %v230
    %v286 = vunpack.c.l.b16 %v231
    %v287 = vunpack.c.l.b16 %v232
    %v288 = vunpack.c.l.b16 %v233
    %v289 = vpack.c.b16 %v274, %v273
    %v290 = vpack.c.b16 %v276, %v275
    %v291 = vpack.c.b16 %v278, %v277
    %v292 = vpack.c.b16 %v280, %v279
    %v293 = vpack.c.b16 %v282, %v281
    %v294 = vpack.c.b16 %v284, %v283
    %v295 = vpack.c.b16 %v286, %v285
    %v296 = vpack.c.b16 %v288, %v287
    %v321 = vunpack.c.l.b16 %v234
    %v322 = vunpack.c.l.b16 %v235
    %v323 = vunpack.c.l.b16 %v236
    %v324 = vunpack.c.l.b16 %v237
    %v325 = vunpack.c.l.b16 %v238
    %v326 = vunpack.c.l.b16 %v239
    %v327 = vunpack.c.l.b16 %v240
    %v328 = vunpack.c.l.b16 %v241
    %v329 = vunpack.c.l.b16 %v242
    %v330 = vunpack.c.l.b16 %v243
    %v331 = vunpack.c.l.b16 %v244
    %v332 = vunpack.c.l.b16 %v245
    %v333 = vunpack.c.l.b16 %v246
    %v334 = vunpack.c.l.b16 %v247
    %v335 = vunpack.c.l.b16 %v248
    %v336 = vunpack.c.l.b16 %v249
    %v337 = vpack.c.b16 %v322, %v321
    %v338 = vpack.c.b16 %v324, %v323
    %v339 = vpack.c.b16 %v326, %v325
    %v340 = vpack.c.b16 %v328, %v327
    %v341 = vpack.c.b16 %v330, %v329
    %v342 = vpack.c.b16 %v332, %v331
    %v343 = vpack.c.b16 %v334, %v333
    %v344 = vpack.c.b16 %v336, %v335
    %353 = vmatprep.subr.bf16.mxu0 0
    %354 = vmatpush1.bf16.msra.mxu0 %v337
    %355 = vmatprep.subr.bf16.mxu0 0
    %356 = vmatpush1.bf16.msra.mxu0 %v338
    %357 = vmatprep.subr.bf16.mxu0 0
    %358 = vmatpush1.bf16.msra.mxu0 %v339
    %359 = vmatprep.subr.bf16.mxu0 0
    %360 = vmatpush1.bf16.msra.mxu0 %v340
    %361 = vmatprep.subr.bf16.mxu0 0
    %362 = vmatpush1.bf16.msra.mxu0 %v341
    %363 = vmatprep.subr.bf16.mxu0 0
    %364 = vmatpush1.bf16.msra.mxu0 %v342
    %365 = vmatprep.subr.bf16.mxu0 0
    %366 = vmatpush1.bf16.msra.mxu0 %v343
    %367 = vmatprep.subr.bf16.mxu0 0
    %368 = vmatpush1.bf16.msra.mxu0 %v344
    %369 = vmatprep.subr.bf16.mxu0 0
    %370 = vmatpush1.bf16.msra.mxu0 0
    %371 = vmatprep.subr.bf16.mxu0 0
    %372 = vmatpush1.bf16.msra.mxu0 0
    %373 = vmatprep.subr.bf16.mxu0 0
    %374 = vmatpush1.bf16.msra.mxu0 0
    %375 = vmatprep.subr.bf16.mxu0 0
    %376 = vmatpush1.bf16.msra.mxu0 0
    %377 = vmatprep.subr.bf16.mxu0 0
    %378 = vmatpush1.bf16.msra.mxu0 0
    %379 = vmatprep.subr.bf16.mxu0 0
    %380 = vmatpush1.bf16.msra.mxu0 0
    %381 = vmatprep.subr.bf16.mxu0 0
    %382 = vmatpush1.bf16.msra.mxu0 0
    %383 = vmatprep.subr.bf16.mxu0 0
    %384 = vmatpush1.bf16.msra.mxu0 0
    %385 = vmatprep.mubr.bf16.mxu0 0
    %386 = vmatmul.mubr.bf16.gmra.mrb[0].mxu0 %v289
    %v387 = vpop.f32.mrb[0].mxu0
    %v388 = vadd.f32 %v255, %v387
    %v389 = vpop.f32.mrb[0].mxu0
    %v390 = vpop.f32.mrb[0].mxu0
    %v391 = vadd.f32 %v255, %v390
    %v392 = vpop.f32.mrb[0].mxu0
    %393 = vmatprep.mubr.bf16.mxu0 0
    %394 = vmatmul.mubr.bf16.gmra.mrb[0].mxu0 %v290
    %v395 = vpop.f32.mrb[0].mxu0
    %v396 = vadd.f32 %v255, %v395
    %v397 = vpop.f32.mrb[0].mxu0
    %v398 = vpop.f32.mrb[0].mxu0
    %v399 = vadd.f32 %v255, %v398
    %v400 = vpop.f32.mrb[0].mxu0
    %401 = vmatprep.mubr.bf16.mxu0 0
    %402 = vmatmul.mubr.bf16.gmra.mrb[0].mxu0 %v291
    %v403 = vpop.f32.mrb[0].mxu0
    %v404 = vadd.f32 %v255, %v403
    %v405 = vpop.f32.mrb[0].mxu0
    %v406 = vpop.f32.mrb[0].mxu0
    %v407 = vadd.f32 %v255, %v406
    %v408 = vpop.f32.mrb[0].mxu0
    %409 = vmatprep.mubr.bf16.mxu0 0
    %410 = vmatmul.mubr.bf16.gmra.mrb[0].mxu0 %v292
    %v411 = vpop.f32.mrb[0].mxu0
    %v412 = vadd.f32 %v255, %v411
    %v413 = vpop.f32.mrb[0].mxu0
    %v414 = vpop.f32.mrb[0].mxu0
    %v415 = vadd.f32 %v255, %v414
    %v416 = vpop.f32.mrb[0].mxu0
    %417 = vmatprep.mubr.bf16.mxu0 0
    %418 = vmatmul.mubr.bf16.gmra.mrb[0].mxu0 %v293
    %v419 = vpop.f32.mrb[0].mxu0
    %v420 = vadd.f32 %v255, %v419
    %v421 = vpop.f32.mrb[0].mxu0
    %v422 = vpop.f32.mrb[0].mxu0
    %v423 = vadd.f32 %v255, %v422
    %v424 = vpop.f32.mrb[0].mxu0
    %425 = vmatprep.mubr.bf16.mxu0 0
    %426 = vmatmul.mubr.bf16.gmra.mrb[0].mxu0 %v294
    %v427 = vpop.f32.mrb[0].mxu0
    %v428 = vadd.f32 %v255, %v427
    %v429 = vpop.f32.mrb[0].mxu0
    %v430 = vpop.f32.mrb[0].mxu0
    %v431 = vadd.f32 %v255, %v430
    %v432 = vpop.f32.mrb[0].mxu0
    %433 = vmatprep.mubr.bf16.mxu0 0
    %434 = vmatmul.mubr.bf16.gmra.mrb[0].mxu0 %v295
    %v435 = vpop.f32.mrb[0].mxu0
    %v436 = vadd.f32 %v255, %v435
    %v437 = vpop.f32.mrb[0].mxu0
    %v438 = vpop.f32.mrb[0].mxu0
    %v439 = vadd.f32 %v255, %v438
    %v440 = vpop.f32.mrb[0].mxu0
    %441 = vmatprep.mubr.bf16.mxu0 0
    %442 = vmatmul.mubr.bf16.gmra.mrb[0].mxu0 %v296
    %v443 = vpop.f32.mrb[0].mxu0
    %v444 = vadd.f32 %v255, %v443
    %v445 = vpop.f32.mrb[0].mxu0
    %v446 = vpop.f32.mrb[0].mxu0
    %v447 = vadd.f32 %v255, %v446
    %v448 = vpop.f32.mrb[0].mxu0
    %449 = vdwg.mxu0
    %v450 = vmax.f32 %v388, 0.0
    %v451 = vmax.f32 %v391, 0.0
    %v452 = vmax.f32 %v396, 0.0
    %v453 = vmax.f32 %v399, 0.0
    %v454 = vmax.f32 %v404, 0.0
    %v455 = vmax.f32 %v407, 0.0
    %v456 = vmax.f32 %v412, 0.0
    %v457 = vmax.f32 %v415, 0.0
    %v458 = vmax.f32 %v420, 0.0
    %v459 = vmax.f32 %v423, 0.0
    %v460 = vmax.f32 %v428, 0.0
    %v461 = vmax.f32 %v431, 0.0
    %v462 = vmax.f32 %v436, 0.0
    %v463 = vmax.f32 %v439, 0.0
    %v464 = vmax.f32 %v444, 0.0
    %v465 = vmax.f32 %v447, 0.0
    %v466 = vpack.c.bf16 %v451, %v450
    %v467 = vpack.c.bf16 %v453, %v452
    %v468 = vpack.c.bf16 %v455, %v454
    %v469 = vpack.c.bf16 %v457, %v456
    %v470 = vpack.c.bf16 %v459, %v458
    %v471 = vpack.c.bf16 %v461, %v460
    %v472 = vpack.c.bf16 %v463, %v462
    %v473 = vpack.c.bf16 %v465, %v464
    %v474 = vld [vmem:[#allocation8] sm:$0xf]
    %v475 = vld [vmem:[#allocation8 + $0x4] sm:$0xf]
    %v476 = vld [vmem:[#allocation8 + $0x8] sm:$0xf]
    %v477 = vld [vmem:[#allocation8 + $0xc] sm:$0xf]
    %v478 = vld [vmem:[#allocation8 + $0x10] sm:$0xf]
    %v479 = vld [vmem:[#allocation8 + $0x14] sm:$0xf]
    %v480 = vld [vmem:[#allocation8 + $0x18] sm:$0xf]
    %v481 = vld [vmem:[#allocation8 + $0x1c] sm:$0xf]
    %v482 = vld [vmem:[#allocation8 + $0x20] sm:$0xf]
    %v483 = vld [vmem:[#allocation8 + $0x24] sm:$0xf]
    %v484 = vld [vmem:[#allocation8 + $0x28] sm:$0xf]
    %v485 = vld [vmem:[#allocation8 + $0x2c] sm:$0xf]
    %v486 = vld [vmem:[#allocation8 + $0x30] sm:$0xf]
    %v487 = vld [vmem:[#allocation8 + $0x34] sm:$0xf]
    %v488 = vld [vmem:[#allocation8 + $0x38] sm:$0xf]
    %v489 = vld [vmem:[#allocation8 + $0x3c] sm:$0xf]
    %v490 = vld [vmem:[%s5] sm:$0x1]
    %v492 = vlaneseq
    %v493 = vshrl.u32 %v492, 7
    %v494 = vsub.s32 0, %v493
    %v495 = vrot.slane %v490, %v494
    %v513 = vunpack.c.l.b16 %v474
    %v514 = vunpack.c.l.b16 %v475
    %v515 = vunpack.c.l.b16 %v476
    %v516 = vunpack.c.l.b16 %v477
    %v517 = vunpack.c.l.b16 %v478
    %v518 = vunpack.c.l.b16 %v479
    %v519 = vunpack.c.l.b16 %v480
    %v520 = vunpack.c.l.b16 %v481
    %v521 = vunpack.c.l.b16 %v482
    %v522 = vunpack.c.l.b16 %v483
    %v523 = vunpack.c.l.b16 %v484
    %v524 = vunpack.c.l.b16 %v485
    %v525 = vunpack.c.l.b16 %v486
    %v526 = vunpack.c.l.b16 %v487
    %v527 = vunpack.c.l.b16 %v488
    %v528 = vunpack.c.l.b16 %v489
    %v529 = vpack.c.b16 %v514, %v513
    %v530 = vpack.c.b16 %v516, %v515
    %v531 = vpack.c.b16 %v518, %v517
    %v532 = vpack.c.b16 %v520, %v519
    %v533 = vpack.c.b16 %v522, %v521
    %v534 = vpack.c.b16 %v524, %v523
    %v535 = vpack.c.b16 %v526, %v525
    %v536 = vpack.c.b16 %v528, %v527
    %545 = vmatprep.subr.bf16.mxu0 0
    %546 = vmatpush1.bf16.msra.mxu0 %v529
    %547 = vmatprep.subr.bf16.mxu0 0
    %548 = vmatpush1.bf16.msra.mxu0 %v530
    %549 = vmatprep.subr.bf16.mxu0 0
    %550 = vmatpush1.bf16.msra.mxu0 %v531
    %551 = vmatprep.subr.bf16.mxu0 0
    %552 = vmatpush1.bf16.msra.mxu0 %v532
    %553 = vmatprep.subr.bf16.mxu0 0
    %554 = vmatpush1.bf16.msra.mxu0 %v533
    %555 = vmatprep.subr.bf16.mxu0 0
    %556 = vmatpush1.bf16.msra.mxu0 %v534
    %557 = vmatprep.subr.bf16.mxu0 0
    %558 = vmatpush1.bf16.msra.mxu0 %v535
    %559 = vmatprep.subr.bf16.mxu0 0
    %560 = vmatpush1.bf16.msra.mxu0 %v536
    %561 = vmatprep.subr.bf16.mxu0 0
    %562 = vmatpush1.bf16.msra.mxu0 0
    %563 = vmatprep.subr.bf16.mxu0 0
    %564 = vmatpush1.bf16.msra.mxu0 0
    %565 = vmatprep.subr.bf16.mxu0 0
    %566 = vmatpush1.bf16.msra.mxu0 0
    %567 = vmatprep.subr.bf16.mxu0 0
    %568 = vmatpush1.bf16.msra.mxu0 0
    %569 = vmatprep.subr.bf16.mxu0 0
    %570 = vmatpush1.bf16.msra.mxu0 0
    %571 = vmatprep.subr.bf16.mxu0 0
    %572 = vmatpush1.bf16.msra.mxu0 0
    %573 = vmatprep.subr.bf16.mxu0 0
    %574 = vmatpush1.bf16.msra.mxu0 0
    %575 = vmatprep.subr.bf16.mxu0 0
    %576 = vmatpush1.bf16.msra.mxu0 0
    %577 = vmatprep.mubr.bf16.mxu0 0
    %578 = vmatmul.mubr.bf16.gmra.mrb[0].mxu0 %v466
    %v579 = vpop.f32.mrb[0].mxu0
    %v580 = vadd.f32 %v495, %v579
    %v581 = vpop.f32.mrb[0].mxu0
    %v582 = vpop.f32.mrb[0].mxu0
    %v583 = vadd.f32 %v495, %v582
    %v584 = vpop.f32.mrb[0].mxu0
    %585 = vmatprep.mubr.bf16.mxu0 0
    %586 = vmatmul.mubr.bf16.gmra.mrb[0].mxu0 %v467
    %v587 = vpop.f32.mrb[0].mxu0
    %v588 = vadd.f32 %v495, %v587
    %v589 = vpop.f32.mrb[0].mxu0
    %v590 = vpop.f32.mrb[0].mxu0
    %v591 = vadd.f32 %v495, %v590
    %v592 = vpop.f32.mrb[0].mxu0
    %593 = vmatprep.mubr.bf16.mxu0 0
    %594 = vmatmul.mubr.bf16.gmra.mrb[0].mxu0 %v468
    %v595 = vpop.f32.mrb[0].mxu0
    %v596 = vadd.f32 %v495, %v595
    %v597 = vpop.f32.mrb[0].mxu0
    %v598 = vpop.f32.mrb[0].mxu0
    %v599 = vadd.f32 %v495, %v598
    %v600 = vpop.f32.mrb[0].mxu0
    %601 = vmatprep.mubr.bf16.mxu0 0
    %602 = vmatmul.mubr.bf16.gmra.mrb[0].mxu0 %v469
    %v603 = vpop.f32.mrb[0].mxu0
    %v604 = vadd.f32 %v495, %v603
    %v605 = vpop.f32.mrb[0].mxu0
    %v606 = vpop.f32.mrb[0].mxu0
    %v607 = vadd.f32 %v495, %v606
    %v608 = vpop.f32.mrb[0].mxu0
    %609 = vmatprep.mubr.bf16.mxu0 0
    %610 = vmatmul.mubr.bf16.gmra.mrb[0].mxu0 %v470
    %v611 = vpop.f32.mrb[0].mxu0
    %v612 = vadd.f32 %v495, %v611
    %v613 = vpop.f32.mrb[0].mxu0
    %v614 = vpop.f32.mrb[0].mxu0
    %v615 = vadd.f32 %v495, %v614
    %v616 = vpop.f32.mrb[0].mxu0
    %617 = vmatprep.mubr.bf16.mxu0 0
    %618 = vmatmul.mubr.bf16.gmra.mrb[0].mxu0 %v471
    %v619 = vpop.f32.mrb[0].mxu0
    %v620 = vadd.f32 %v495, %v619
    %v621 = vpop.f32.mrb[0].mxu0
    %v622 = vpop.f32.mrb[0].mxu0
    %v623 = vadd.f32 %v495, %v622
    %v624 = vpop.f32.mrb[0].mxu0
    %625 = vmatprep.mubr.bf16.mxu0 0
    %626 = vmatmul.mubr.bf16.gmra.mrb[0].mxu0 %v472
    %v627 = vpop.f32.mrb[0].mxu0
    %v628 = vadd.f32 %v495, %v627
    %v629 = vpop.f32.mrb[0].mxu0
    %v630 = vpop.f32.mrb[0].mxu0
    %v631 = vadd.f32 %v495, %v630
    %v632 = vpop.f32.mrb[0].mxu0
    %633 = vmatprep.mubr.bf16.mxu0 0
    %634 = vmatmul.mubr.bf16.gmra.mrb[0].mxu0 %v473
    %v635 = vpop.f32.mrb[0].mxu0
    %v636 = vadd.f32 %v495, %v635
    %v637 = vpop.f32.mrb[0].mxu0
    %v638 = vpop.f32.mrb[0].mxu0
    %v639 = vadd.f32 %v495, %v638
    %v640 = vpop.f32.mrb[0].mxu0
    %641 = vdwg.mxu0
    %v642 = vmax.f32 %v580, 0.0
    %v643 = vmax.f32 %v583, 0.0
    %v644 = vmax.f32 %v588, 0.0
    %v645 = vmax.f32 %v591, 0.0
    %v646 = vmax.f32 %v596, 0.0
    %v647 = vmax.f32 %v599, 0.0
    %v648 = vmax.f32 %v604, 0.0
    %v649 = vmax.f32 %v607, 0.0
    %v650 = vmax.f32 %v612, 0.0
    %v651 = vmax.f32 %v615, 0.0
    %v652 = vmax.f32 %v620, 0.0
    %v653 = vmax.f32 %v623, 0.0
    %v654 = vmax.f32 %v628, 0.0
    %v655 = vmax.f32 %v631, 0.0
    %v656 = vmax.f32 %v636, 0.0
    %v657 = vmax.f32 %v639, 0.0
    %v658 = vld [vmem:[#allocation5] sm:$0xf]
    %v659 = vld [vmem:[#allocation5 + $0x4] sm:$0xf]
    %v660 = vld [vmem:[#allocation5 + $0x8] sm:$0xf]
    %v661 = vld [vmem:[#allocation5 + $0xc] sm:$0xf]
    %v662 = vld [vmem:[#allocation5 + $0x10] sm:$0xf]
    %v663 = vld [vmem:[#allocation5 + $0x14] sm:$0xf]
    %v664 = vld [vmem:[#allocation5 + $0x18] sm:$0xf]
    %v665 = vld [vmem:[#allocation5 + $0x1c] sm:$0xf]
    %v666 = vld [vmem:[#allocation5 + $0x20] sm:$0xf]
    %v667 = vld [vmem:[#allocation5 + $0x24] sm:$0xf]
    %v668 = vld [vmem:[#allocation5 + $0x28] sm:$0xf]
    %v669 = vld [vmem:[#allocation5 + $0x2c] sm:$0xf]
    %v670 = vld [vmem:[#allocation5 + $0x30] sm:$0xf]
    %v671 = vld [vmem:[#allocation5 + $0x34] sm:$0xf]
    %v672 = vld [vmem:[#allocation5 + $0x38] sm:$0xf]
    %v673 = vld [vmem:[#allocation5 + $0x3c] sm:$0xf]
    %v674 = vpack.c.bf16 %v643, %v642
    %v675 = vpack.c.bf16 %v645, %v644
    %v676 = vpack.c.bf16 %v647, %v646
    %v677 = vpack.c.bf16 %v649, %v648
    %v678 = vpack.c.bf16 %v651, %v650
    %v679 = vpack.c.bf16 %v653, %v652
    %v680 = vpack.c.bf16 %v655, %v654
    %v681 = vpack.c.bf16 %v657, %v656
    %v682 = vld [vmem:[#allocation10] sm:$0xf]
    %v683 = vld [vmem:[#allocation10 + $0x4] sm:$0xf]
    %v684 = vld [vmem:[#allocation10 + $0x8] sm:$0xf]
    %v685 = vld [vmem:[#allocation10 + $0xc] sm:$0xf]
    %v686 = vld [vmem:[#allocation10 + $0x10] sm:$0xf]
    %v687 = vld [vmem:[#allocation10 + $0x14] sm:$0xf]
    %v688 = vld [vmem:[#allocation10 + $0x18] sm:$0xf]
    %v689 = vld [vmem:[#allocation10 + $0x1c] sm:$0xf]
    %v690 = vld [vmem:[#allocation10 + $0x20] sm:$0xf]
    %v691 = vld [vmem:[#allocation10 + $0x24] sm:$0xf]
    %v692 = vld [vmem:[#allocation10 + $0x28] sm:$0xf]
    %v693 = vld [vmem:[#allocation10 + $0x2c] sm:$0xf]
    %v694 = vld [vmem:[#allocation10 + $0x30] sm:$0xf]
    %v695 = vld [vmem:[#allocation10 + $0x34] sm:$0xf]
    %v696 = vld [vmem:[#allocation10 + $0x38] sm:$0xf]
    %v697 = vld [vmem:[#allocation10 + $0x3c] sm:$0xf]
    %v714 = vunpack.c.l.b16 %v682
    %v715 = vunpack.c.l.b16 %v683
    %v716 = vunpack.c.l.b16 %v684
    %v717 = vunpack.c.l.b16 %v685
    %v718 = vunpack.c.l.b16 %v686
    %v719 = vunpack.c.l.b16 %v687
    %v720 = vunpack.c.l.b16 %v688
    %v721 = vunpack.c.l.b16 %v689
    %v722 = vunpack.c.l.b16 %v690
    %v723 = vunpack.c.l.b16 %v691
    %v724 = vunpack.c.l.b16 %v692
    %v725 = vunpack.c.l.b16 %v693
    %v726 = vunpack.c.l.b16 %v694
    %v727 = vunpack.c.l.b16 %v695
    %v728 = vunpack.c.l.b16 %v696
    %v729 = vunpack.c.l.b16 %v697
    %v730 = vpack.c.b16 %v715, %v714
    %v731 = vpack.c.b16 %v717, %v716
    %v732 = vpack.c.b16 %v719, %v718
    %v733 = vpack.c.b16 %v721, %v720
    %v734 = vpack.c.b16 %v723, %v722
    %v735 = vpack.c.b16 %v725, %v724
    %v736 = vpack.c.b16 %v727, %v726
    %v737 = vpack.c.b16 %v729, %v728
    %746 = vmatprep.subr.bf16.mxu0 0
    %747 = vmatpush1.bf16.msra.mxu0 %v730
    %748 = vmatprep.subr.bf16.mxu0 0
    %749 = vmatpush1.bf16.msra.mxu0 %v731
    %750 = vmatprep.subr.bf16.mxu0 0
    %751 = vmatpush1.bf16.msra.mxu0 %v732
    %752 = vmatprep.subr.bf16.mxu0 0
    %753 = vmatpush1.bf16.msra.mxu0 %v733
    %754 = vmatprep.subr.bf16.mxu0 0
    %755 = vmatpush1.bf16.msra.mxu0 %v734
    %756 = vmatprep.subr.bf16.mxu0 0
    %757 = vmatpush1.bf16.msra.mxu0 %v735
    %758 = vmatprep.subr.bf16.mxu0 0
    %759 = vmatpush1.bf16.msra.mxu0 %v736
    %760 = vmatprep.subr.bf16.mxu0 0
    %761 = vmatpush1.bf16.msra.mxu0 %v737
    %762 = vmatprep.subr.bf16.mxu0 0
    %763 = vmatpush1.bf16.msra.mxu0 0
    %764 = vmatprep.subr.bf16.mxu0 0
    %765 = vmatpush1.bf16.msra.mxu0 0
    %766 = vmatprep.subr.bf16.mxu0 0
    %767 = vmatpush1.bf16.msra.mxu0 0
    %768 = vmatprep.subr.bf16.mxu0 0
    %769 = vmatpush1.bf16.msra.mxu0 0
    %770 = vmatprep.subr.bf16.mxu0 0
    %771 = vmatpush1.bf16.msra.mxu0 0
    %772 = vmatprep.subr.bf16.mxu0 0
    %773 = vmatpush1.bf16.msra.mxu0 0
    %774 = vmatprep.subr.bf16.mxu0 0
    %775 = vmatpush1.bf16.msra.mxu0 0
    %776 = vmatprep.subr.bf16.mxu0 0
    %777 = vmatpush1.bf16.msra.mxu0 0
    %778 = vmatprep.mubr.bf16.mxu0 0
    %779 = vmatmul.mubr.bf16.gmra.mrb[0].mxu0 %v674
    %v780 = vpop.f32.mrb[0].mxu0
    %v781 = vadd.f32 0.0, %v780
    %v782 = vpop.f32.mrb[0].mxu0
    %v783 = vpop.f32.mrb[0].mxu0
    %v784 = vadd.f32 0.0, %v783
    %v785 = vpop.f32.mrb[0].mxu0
    %786 = vmatprep.mubr.bf16.mxu0 0
    %787 = vmatmul.mubr.bf16.gmra.mrb[0].mxu0 %v675
    %v788 = vpop.f32.mrb[0].mxu0
    %v789 = vadd.f32 0.0, %v788
    %v790 = vpop.f32.mrb[0].mxu0
    %v791 = vpop.f32.mrb[0].mxu0
    %v792 = vadd.f32 0.0, %v791
    %v793 = vpop.f32.mrb[0].mxu0
    %794 = vmatprep.mubr.bf16.mxu0 0
    %795 = vmatmul.mubr.bf16.gmra.mrb[0].mxu0 %v676
    %v796 = vpop.f32.mrb[0].mxu0
    %v797 = vadd.f32 0.0, %v796
    %v798 = vpop.f32.mrb[0].mxu0
    %v799 = vpop.f32.mrb[0].mxu0
    %v800 = vadd.f32 0.0, %v799
    %v801 = vpop.f32.mrb[0].mxu0
    %802 = vmatprep.mubr.bf16.mxu0 0
    %803 = vmatmul.mubr.bf16.gmra.mrb[0].mxu0 %v677
    %v804 = vpop.f32.mrb[0].mxu0
    %v805 = vadd.f32 0.0, %v804
    %v806 = vpop.f32.mrb[0].mxu0
    %v807 = vpop.f32.mrb[0].mxu0
    %v808 = vadd.f32 0.0, %v807
    %v809 = vpop.f32.mrb[0].mxu0
    %810 = vmatprep.mubr.bf16.mxu0 0
    %811 = vmatmul.mubr.bf16.gmra.mrb[0].mxu0 %v678
    %v812 = vpop.f32.mrb[0].mxu0
    %v813 = vadd.f32 0.0, %v812
    %v814 = vpop.f32.mrb[0].mxu0
    %v815 = vpop.f32.mrb[0].mxu0
    %v816 = vadd.f32 0.0, %v815
    %v817 = vpop.f32.mrb[0].mxu0
    %818 = vmatprep.mubr.bf16.mxu0 0
    %819 = vmatmul.mubr.bf16.gmra.mrb[0].mxu0 %v679
    %v820 = vpop.f32.mrb[0].mxu0
    %v821 = vadd.f32 0.0, %v820
    %v822 = vpop.f32.mrb[0].mxu0
    %v823 = vpop.f32.mrb[0].mxu0
    %v824 = vadd.f32 0.0, %v823
    %v825 = vpop.f32.mrb[0].mxu0
    %826 = vmatprep.mubr.bf16.mxu0 0
    %827 = vmatmul.mubr.bf16.gmra.mrb[0].mxu0 %v680
    %v828 = vpop.f32.mrb[0].mxu0
    %v829 = vadd.f32 0.0, %v828
    %v830 = vpop.f32.mrb[0].mxu0
    %v831 = vpop.f32.mrb[0].mxu0
    %v832 = vadd.f32 0.0, %v831
    %v833 = vpop.f32.mrb[0].mxu0
    %834 = vmatprep.mubr.bf16.mxu0 0
    %835 = vmatmul.mubr.bf16.gmra.mrb[0].mxu0 %v681
    %v836 = vpop.f32.mrb[0].mxu0
    %v837 = vadd.f32 0.0, %v836
    %v838 = vpop.f32.mrb[0].mxu0
    %v839 = vpop.f32.mrb[0].mxu0
    %v840 = vadd.f32 0.0, %v839
    %v841 = vpop.f32.mrb[0].mxu0
    %842 = vdwg.mxu0
    %v843 = vpack.c.bf16 %v784, %v781
    %v844 = vpack.c.bf16 %v792, %v789
    %v845 = vpack.c.bf16 %v800, %v797
    %v846 = vpack.c.bf16 %v808, %v805
    %v847 = vpack.c.bf16 %v816, %v813
    %v848 = vpack.c.bf16 %v824, %v821
    %v849 = vpack.c.bf16 %v832, %v829
    %v850 = vpack.c.bf16 %v840, %v837
    %v851 = vld [vmem:[%s7] sm:$0x1]
    %v853 = vlaneseq
    %v854 = vshrl.u32 %v853, 7
    %v855 = vsub.s32 0, %v854
    %v856 = vrot.slane %v851, %v855
    %v874 = vunpack.c.l.b16 %v658
    %v875 = vunpack.c.l.b16 %v659
    %v876 = vunpack.c.l.b16 %v660
    %v877 = vunpack.c.l.b16 %v661
    %v878 = vunpack.c.l.b16 %v662
    %v879 = vunpack.c.l.b16 %v663
    %v880 = vunpack.c.l.b16 %v664
    %v881 = vunpack.c.l.b16 %v665
    %v882 = vunpack.c.l.b16 %v666
    %v883 = vunpack.c.l.b16 %v667
    %v884 = vunpack.c.l.b16 %v668
    %v885 = vunpack.c.l.b16 %v669
    %v886 = vunpack.c.l.b16 %v670
    %v887 = vunpack.c.l.b16 %v671
    %v888 = vunpack.c.l.b16 %v672
    %v889 = vunpack.c.l.b16 %v673
    %v890 = vpack.c.b16 %v875, %v874
    %v891 = vpack.c.b16 %v877, %v876
    %v892 = vpack.c.b16 %v879, %v878
    %v893 = vpack.c.b16 %v881, %v880
    %v894 = vpack.c.b16 %v883, %v882
    %v895 = vpack.c.b16 %v885, %v884
    %v896 = vpack.c.b16 %v887, %v886
    %v897 = vpack.c.b16 %v889, %v888
    %906 = vmatprep.subr.bf16.mxu0 0
    %907 = vmatpush1.bf16.msra.mxu0 %v843
    %908 = vmatprep.subr.bf16.mxu0 0
    %909 = vmatpush1.bf16.msra.mxu0 %v844
    %910 = vmatprep.subr.bf16.mxu0 0
    %911 = vmatpush1.bf16.msra.mxu0 %v845
    %912 = vmatprep.subr.bf16.mxu0 0
    %913 = vmatpush1.bf16.msra.mxu0 %v846
    %914 = vmatprep.subr.bf16.mxu0 0
    %915 = vmatpush1.bf16.msra.mxu0 %v847
    %916 = vmatprep.subr.bf16.mxu0 0
    %917 = vmatpush1.bf16.msra.mxu0 %v848
    %918 = vmatprep.subr.bf16.mxu0 0
    %919 = vmatpush1.bf16.msra.mxu0 %v849
    %920 = vmatprep.subr.bf16.mxu0 0
    %921 = vmatpush1.bf16.msra.mxu0 %v850
    %922 = vmatprep.subr.bf16.mxu0 0
    %923 = vmatpush1.bf16.msra.mxu0 0
    %924 = vmatprep.subr.bf16.mxu0 0
    %925 = vmatpush1.bf16.msra.mxu0 0
    %926 = vmatprep.subr.bf16.mxu0 0
    %927 = vmatpush1.bf16.msra.mxu0 0
    %928 = vmatprep.subr.bf16.mxu0 0
    %929 = vmatpush1.bf16.msra.mxu0 0
    %930 = vmatprep.subr.bf16.mxu0 0
    %931 = vmatpush1.bf16.msra.mxu0 0
    %932 = vmatprep.subr.bf16.mxu0 0
    %933 = vmatpush1.bf16.msra.mxu0 0
    %934 = vmatprep.subr.bf16.mxu0 0
    %935 = vmatpush1.bf16.msra.mxu0 0
    %936 = vmatprep.subr.bf16.mxu0 0
    %937 = vmatpush1.bf16.msra.mxu0 0
    %938 = vmatprep.mubr.bf16.mxu0 0
    %939 = vmatmul.mubr.bf16.gmra.mrb[0].mxu0 %v890
    %v940 = vpop.f32.mrb[0].mxu0
    %v941 = vadd.f32 %v856, %v940
    %v942 = vpop.f32.mrb[0].mxu0
    %v943 = vpop.f32.mrb[0].mxu0
    %v944 = vadd.f32 %v856, %v943
    %v945 = vpop.f32.mrb[0].mxu0
    %946 = vmatprep.mubr.bf16.mxu0 0
    %947 = vmatmul.mubr.bf16.gmra.mrb[0].mxu0 %v891
    %v948 = vpop.f32.mrb[0].mxu0
    %v949 = vadd.f32 %v856, %v948
    %v950 = vpop.f32.mrb[0].mxu0
    %v951 = vpop.f32.mrb[0].mxu0
    %v952 = vadd.f32 %v856, %v951
    %v953 = vpop.f32.mrb[0].mxu0
    %954 = vmatprep.mubr.bf16.mxu0 0
    %955 = vmatmul.mubr.bf16.gmra.mrb[0].mxu0 %v892
    %v956 = vpop.f32.mrb[0].mxu0
    %v957 = vadd.f32 %v856, %v956
    %v958 = vpop.f32.mrb[0].mxu0
    %v959 = vpop.f32.mrb[0].mxu0
    %v960 = vadd.f32 %v856, %v959
    %v961 = vpop.f32.mrb[0].mxu0
    %962 = vmatprep.mubr.bf16.mxu0 0
    %963 = vmatmul.mubr.bf16.gmra.mrb[0].mxu0 %v893
    %v964 = vpop.f32.mrb[0].mxu0
    %v965 = vadd.f32 %v856, %v964
    %v966 = vpop.f32.mrb[0].mxu0
    %v967 = vpop.f32.mrb[0].mxu0
    %v968 = vadd.f32 %v856, %v967
    %v969 = vpop.f32.mrb[0].mxu0
    %970 = vmatprep.mubr.bf16.mxu0 0
    %971 = vmatmul.mubr.bf16.gmra.mrb[0].mxu0 %v894
    %v972 = vpop.f32.mrb[0].mxu0
    %v973 = vadd.f32 %v856, %v972
    %v974 = vpop.f32.mrb[0].mxu0
    %v975 = vpop.f32.mrb[0].mxu0
    %v976 = vadd.f32 %v856, %v975
    %v977 = vpop.f32.mrb[0].mxu0
    %978 = vmatprep.mubr.bf16.mxu0 0
    %979 = vmatmul.mubr.bf16.gmra.mrb[0].mxu0 %v895
    %v980 = vpop.f32.mrb[0].mxu0
    %v981 = vadd.f32 %v856, %v980
    %v982 = vpop.f32.mrb[0].mxu0
    %v983 = vpop.f32.mrb[0].mxu0
    %v984 = vadd.f32 %v856, %v983
    %v985 = vpop.f32.mrb[0].mxu0
    %986 = vmatprep.mubr.bf16.mxu0 0
    %987 = vmatmul.mubr.bf16.gmra.mrb[0].mxu0 %v896
    %v988 = vpop.f32.mrb[0].mxu0
    %v989 = vadd.f32 %v856, %v988
    %v990 = vpop.f32.mrb[0].mxu0
    %v991 = vpop.f32.mrb[0].mxu0
    %v992 = vadd.f32 %v856, %v991
    %v993 = vpop.f32.mrb[0].mxu0
    %994 = vmatprep.mubr.bf16.mxu0 0
    %995 = vmatmul.mubr.bf16.gmra.mrb[0].mxu0 %v897
    %v996 = vpop.f32.mrb[0].mxu0
    %v997 = vadd.f32 %v856, %v996
    %v998 = vpop.f32.mrb[0].mxu0
    %v999 = vpop.f32.mrb[0].mxu0
    %v1000 = vadd.f32 %v856, %v999
    %v1001 = vpop.f32.mrb[0].mxu0
    %1002 = vdwg.mxu0
    %v1003 = vmul.f32 %v941, %v202
    %v1004 = vmul.f32 %v944, %v203
    %v1005 = vmul.f32 %v949, %v204
    %v1006 = vmul.f32 %v952, %v205
    %v1007 = vmul.f32 %v957, %v206
    %v1008 = vmul.f32 %v960, %v207
    %v1009 = vmul.f32 %v965, %v208
    %v1010 = vmul.f32 %v968, %v209
    %v1011 = vmul.f32 %v973, %v210
    %v1012 = vmul.f32 %v976, %v211
    %v1013 = vmul.f32 %v981, %v212
    %v1014 = vmul.f32 %v984, %v213
    %v1015 = vmul.f32 %v989, %v214
    %v1016 = vmul.f32 %v992, %v215
    %v1017 = vmul.f32 %v997, %v216
    %v1018 = vmul.f32 %v1000, %v217
    %v1019 = vadd.f32 %v1003, %v1004
    %v1020 = vadd.f32 %v1019, %v1005
    %v1021 = vadd.f32 %v1020, %v1006
    %v1022 = vadd.f32 %v1021, %v1007
    %v1023 = vadd.f32 %v1022, %v1008
    %v1024 = vadd.f32 %v1023, %v1009
    %v1025 = vadd.f32 %v1024, %v1010
    %v1026 = vadd.f32 %v1025, %v1011
    %v1027 = vadd.f32 %v1026, %v1012
    %v1028 = vadd.f32 %v1027, %v1013
    %v1029 = vadd.f32 %v1028, %v1014
    %v1030 = vadd.f32 %v1029, %v1015
    %v1031 = vadd.f32 %v1030, %v1016
    %v1032 = vadd.f32 %v1031, %v1017
    %v1033 = vadd.f32 %v1032, %v1018
    %v1034 = vrot.slane %v1033, 4
    %v1035 = vadd.f32 %v1033, %v1034
    %v1036 = vrot.slane %v1035, 2
    %v1037 = vadd.f32 %v1035, %v1036
    %v1038 = vrot.slane %v1037, 1
    %v1039 = vadd.f32 %v1037, %v1038
    %v1040 = vmul.f32 %v1039, 0.015625
    %v1041 = vmul.f32 %v1003, %v1003
    %v1042 = vmul.f32 %v1004, %v1004
    %v1043 = vmul.f32 %v1005, %v1005
    %v1044 = vmul.f32 %v1006, %v1006
    %v1045 = vmul.f32 %v1007, %v1007
    %v1046 = vmul.f32 %v1008, %v1008
    %v1047 = vmul.f32 %v1009, %v1009
    %v1048 = vmul.f32 %v1010, %v1010
    %v1049 = vmul.f32 %v1011, %v1011
    %v1050 = vmul.f32 %v1012, %v1012
    %v1051 = vmul.f32 %v1013, %v1013
    %v1052 = vmul.f32 %v1014, %v1014
    %v1053 = vmul.f32 %v1015, %v1015
    %v1054 = vmul.f32 %v1016, %v1016
    %v1055 = vmul.f32 %v1017, %v1017
    %v1056 = vmul.f32 %v1018, %v1018
    %v1057 = vadd.f32 %v1041, %v1042
    %v1058 = vadd.f32 %v1057, %v1043
    %v1059 = vadd.f32 %v1058, %v1044
    %v1060 = vadd.f32 %v1059, %v1045
    %v1061 = vadd.f32 %v1060, %v1046
    %v1062 = vadd.f32 %v1061, %v1047
    %v1063 = vadd.f32 %v1062, %v1048
    %v1064 = vadd.f32 %v1063, %v1049
    %v1065 = vadd.f32 %v1064, %v1050
    %v1066 = vadd.f32 %v1065, %v1051
    %v1067 = vadd.f32 %v1066, %v1052
    %v1068 = vadd.f32 %v1067, %v1053
    %v1069 = vadd.f32 %v1068, %v1054
    %v1070 = vadd.f32 %v1069, %v1055
    %v1071 = vadd.f32 %v1070, %v1056
    %v1072 = vrot.slane %v1071, 4
    %v1073 = vadd.f32 %v1071, %v1072
    %v1074 = vrot.slane %v1073, 2
    %v1075 = vadd.f32 %v1073, %v1074
    %v1076 = vrot.slane %v1075, 1
    %v1077 = vadd.f32 %v1075, %v1076
    %v1078 = vmul.f32 %v1077, 0.015625
    %v1079 = vmul.f32 %v1040, %v1040
    %v1080 = vsub.f32 %v1078, %v1079
    %v1081 = vmax.f32 %v1080, 0.0
    %v1082 = vld [vmem:[%s8] sm:$0x1]
    %v1083 = vadd.f32 %v1081, 1e-05
    %v1084 = vrsqrt.pop %v1083
    %v1085 = vmul.f32 %v1082, %v1084
    %v1086 = vld [vmem:[%s9] sm:$0x1]
    %v1087 = vmul.f32 %v1040, %v1085
    %v1088 = vsub.f32 %v1086, %v1087
    %v1090 = vlaneseq
    %v1091 = vshrl.u32 %v1090, 7
    %v1092 = vsub.s32 0, %v1091
    %v1093 = vrot.slane %v1085, %v1092
    %v1095 = vmul.f32 %v941, %v1093
    %v1096 = vmul.f32 %v944, %v1093
    %v1097 = vmul.f32 %v949, %v1093
    %v1098 = vmul.f32 %v952, %v1093
    %v1099 = vmul.f32 %v957, %v1093
    %v1100 = vmul.f32 %v960, %v1093
    %v1101 = vmul.f32 %v965, %v1093
    %v1102 = vmul.f32 %v968, %v1093
    %v1103 = vmul.f32 %v973, %v1093
    %v1104 = vmul.f32 %v976, %v1093
    %v1105 = vmul.f32 %v981, %v1093
    %v1106 = vmul.f32 %v984, %v1093
    %v1107 = vmul.f32 %v989, %v1093
    %v1108 = vmul.f32 %v992, %v1093
    %v1109 = vmul.f32 %v997, %v1093
    %v1110 = vmul.f32 %v1000, %v1093
    %v1112 = vlaneseq
    %v1113 = vshrl.u32 %v1112, 7
    %v1114 = vsub.s32 0, %v1113
    %v1115 = vrot.slane %v1088, %v1114
    %v1117 = vadd.f32 %v1095, %v1115
    %v1118 = vadd.f32 %v1096, %v1115
    %v1119 = vadd.f32 %v1097, %v1115
    %v1120 = vadd.f32 %v1098, %v1115
    %v1121 = vadd.f32 %v1099, %v1115
    %v1122 = vadd.f32 %v1100, %v1115
    %v1123 = vadd.f32 %v1101, %v1115
    %v1124 = vadd.f32 %v1102, %v1115
    %v1125 = vadd.f32 %v1103, %v1115
    %v1126 = vadd.f32 %v1104, %v1115
    %v1127 = vadd.f32 %v1105, %v1115
    %v1128 = vadd.f32 %v1106, %v1115
    %v1129 = vadd.f32 %v1107, %v1115
    %v1130 = vadd.f32 %v1108, %v1115
    %v1131 = vadd.f32 %v1109, %v1115
    %v1132 = vadd.f32 %v1110, %v1115
    %v1133 = vpack.c.bf16 %v1118, %v1117
    %v1134 = vpack.c.bf16 %v1120, %v1119
    %v1135 = vpack.c.bf16 %v1122, %v1121
    %v1136 = vpack.c.bf16 %v1124, %v1123
    %v1137 = vpack.c.bf16 %v1126, %v1125
    %v1138 = vpack.c.bf16 %v1128, %v1127
    %v1139 = vpack.c.bf16 %v1130, %v1129
    %v1140 = vpack.c.bf16 %v1132, %v1131
    %v1141 = vld [vmem:[#allocation11] sm:$0xf]
    %v1142 = vld [vmem:[#allocation11 + $0x4] sm:$0xf]
    %v1143 = vld [vmem:[#allocation11 + $0x8] sm:$0xf]
    %v1144 = vld [vmem:[#allocation11 + $0xc] sm:$0xf]
    %v1145 = vld [vmem:[#allocation11 + $0x10] sm:$0xf]
    %v1146 = vld [vmem:[#allocation11 + $0x14] sm:$0xf]
    %v1147 = vld [vmem:[#allocation11 + $0x18] sm:$0xf]
    %v1148 = vld [vmem:[#allocation11 + $0x1c] sm:$0xf]
    %v1149 = vld [vmem:[#allocation11 + $0x20] sm:$0xf]
    %v1150 = vld [vmem:[#allocation11 + $0x24] sm:$0xf]
    %v1151 = vld [vmem:[#allocation11 + $0x28] sm:$0xf]
    %v1152 = vld [vmem:[#allocation11 + $0x2c] sm:$0xf]
    %v1153 = vld [vmem:[#allocation11 + $0x30] sm:$0xf]
    %v1154 = vld [vmem:[#allocation11 + $0x34] sm:$0xf]
    %v1155 = vld [vmem:[#allocation11 + $0x38] sm:$0xf]
    %v1156 = vld [vmem:[#allocation11 + $0x3c] sm:$0xf]
    %v1173 = vunpack.c.l.b16 %v1141
    %v1174 = vunpack.c.l.b16 %v1142
    %v1175 = vunpack.c.l.b16 %v1143
    %v1176 = vunpack.c.l.b16 %v1144
    %v1177 = vunpack.c.l.b16 %v1145
    %v1178 = vunpack.c.l.b16 %v1146
    %v1179 = vunpack.c.l.b16 %v1147
    %v1180 = vunpack.c.l.b16 %v1148
    %v1181 = vunpack.c.l.b16 %v1149
    %v1182 = vunpack.c.l.b16 %v1150
    %v1183 = vunpack.c.l.b16 %v1151
    %v1184 = vunpack.c.l.b16 %v1152
    %v1185 = vunpack.c.l.b16 %v1153
    %v1186 = vunpack.c.l.b16 %v1154
    %v1187 = vunpack.c.l.b16 %v1155
    %v1188 = vunpack.c.l.b16 %v1156
    %v1189 = vpack.c.b16 %v1174, %v1173
    %v1190 = vpack.c.b16 %v1176, %v1175
    %v1191 = vpack.c.b16 %v1178, %v1177
    %v1192 = vpack.c.b16 %v1180, %v1179
    %v1193 = vpack.c.b16 %v1182, %v1181
    %v1194 = vpack.c.b16 %v1184, %v1183
    %v1195 = vpack.c.b16 %v1186, %v1185
    %v1196 = vpack.c.b16 %v1188, %v1187
    %1205 = vmatprep.subr.bf16.mxu0 0
    %1206 = vmatpush1.bf16.msra.mxu0 %v1189
    %1207 = vmatprep.subr.bf16.mxu0 0
    %1208 = vmatpush1.bf16.msra.mxu0 %v1190
    %1209 = vmatprep.subr.bf16.mxu0 0
    %1210 = vmatpush1.bf16.msra.mxu0 %v1191
    %1211 = vmatprep.subr.bf16.mxu0 0
    %1212 = vmatpush1.bf16.msra.mxu0 %v1192
    %1213 = vmatprep.subr.bf16.mxu0 0
    %1214 = vmatpush1.bf16.msra.mxu0 %v1193
    %1215 = vmatprep.subr.bf16.mxu0 0
    %1216 = vmatpush1.bf16.msra.mxu0 %v1194
    %1217 = vmatprep.subr.bf16.mxu0 0
    %1218 = vmatpush1.bf16.msra.mxu0 %v1195
    %1219 = vmatprep.subr.bf16.mxu0 0
    %1220 = vmatpush1.bf16.msra.mxu0 %v1196
    %1221 = vmatprep.subr.bf16.mxu0 0
    %1222 = vmatpush1.bf16.msra.mxu0 0
    %1223 = vmatprep.subr.bf16.mxu0 0
    %1224 = vmatpush1.bf16.msra.mxu0 0
    %1225 = vmatprep.subr.bf16.mxu0 0
    %1226 = vmatpush1.bf16.msra.mxu0 0
    %1227 = vmatprep.subr.bf16.mxu0 0
    %1228 = vmatpush1.bf16.msra.mxu0 0
    %1229 = vmatprep.subr.bf16.mxu0 0
    %1230 = vmatpush1.bf16.msra.mxu0 0
    %1231 = vmatprep.subr.bf16.mxu0 0
    %1232 = vmatpush1.bf16.msra.mxu0 0
    %1233 = vmatprep.subr.bf16.mxu0 0
    %1234 = vmatpush1.bf16.msra.mxu0 0
    %1235 = vmatprep.subr.bf16.mxu0 0
    %1236 = vmatpush1.bf16.msra.mxu0 0
    %1237 = vmatprep.mubr.bf16.mxu0 0
    %1238 = vmatmul.mubr.bf16.gmra.mrb[0].mxu0 %v1133
    %v1239 = vpop.f32.mrb[0].mxu0
    %v1240 = vadd.f32 0.0, %v1239
    %v1241 = vpop.f32.mrb[0].mxu0
    %v1242 = vpop.f32.mrb[0].mxu0
    %v1243 = vadd.f32 0.0, %v1242
    %v1244 = vpop.f32.mrb[0].mxu0
    %1245 = vmatprep.mubr.bf16.mxu0 0
    %1246 = vmatmul.mubr.bf16.gmra.mrb[0].mxu0 %v1134
    %v1247 = vpop.f32.mrb[0].mxu0
    %v1248 = vadd.f32 0.0, %v1247
    %v1249 = vpop.f32.mrb[0].mxu0
    %v1250 = vpop.f32.mrb[0].mxu0
    %v1251 = vadd.f32 0.0, %v1250
    %v1252 = vpop.f32.mrb[0].mxu0
    %1253 = vmatprep.mubr.bf16.mxu0 0
    %1254 = vmatmul.mubr.bf16.gmra.mrb[0].mxu0 %v1135
    %v1255 = vpop.f32.mrb[0].mxu0
    %v1256 = vadd.f32 0.0, %v1255
    %v1257 = vpop.f32.mrb[0].mxu0
    %v1258 = vpop.f32.mrb[0].mxu0
    %v1259 = vadd.f32 0.0, %v1258
    %v1260 = vpop.f32.mrb[0].mxu0
    %1261 = vmatprep.mubr.bf16.mxu0 0
    %1262 = vmatmul.mubr.bf16.gmra.mrb[0].mxu0 %v1136
    %v1263 = vpop.f32.mrb[0].mxu0
    %v1264 = vadd.f32 0.0, %v1263
    %v1265 = vpop.f32.mrb[0].mxu0
    %v1266 = vpop.f32.mrb[0].mxu0
    %v1267 = vadd.f32 0.0, %v1266
    %v1268 = vpop.f32.mrb[0].mxu0
    %1269 = vmatprep.mubr.bf16.mxu0 0
    %1270 = vmatmul.mubr.bf16.gmra.mrb[0].mxu0 %v1137
    %v1271 = vpop.f32.mrb[0].mxu0
    %v1272 = vadd.f32 0.0, %v1271
    %v1273 = vpop.f32.mrb[0].mxu0
    %v1274 = vpop.f32.mrb[0].mxu0
    %v1275 = vadd.f32 0.0, %v1274
    %v1276 = vpop.f32.mrb[0].mxu0
    %1277 = vmatprep.mubr.bf16.mxu0 0
    %1278 = vmatmul.mubr.bf16.gmra.mrb[0].mxu0 %v1138
    %v1279 = vpop.f32.mrb[0].mxu0
    %v1280 = vadd.f32 0.0, %v1279
    %v1281 = vpop.f32.mrb[0].mxu0
    %v1282 = vpop.f32.mrb[0].mxu0
    %v1283 = vadd.f32 0.0, %v1282
    %v1284 = vpop.f32.mrb[0].mxu0
    %1285 = vmatprep.mubr.bf16.mxu0 0
    %1286 = vmatmul.mubr.bf16.gmra.mrb[0].mxu0 %v1139
    %v1287 = vpop.f32.mrb[0].mxu0
    %v1288 = vadd.f32 0.0, %v1287
    %v1289 = vpop.f32.mrb[0].mxu0
    %v1290 = vpop.f32.mrb[0].mxu0
    %v1291 = vadd.f32 0.0, %v1290
    %v1292 = vpop.f32.mrb[0].mxu0
    %1293 = vmatprep.mubr.bf16.mxu0 0
    %1294 = vmatmul.mubr.bf16.gmra.mrb[0].mxu0 %v1140
    %v1295 = vpop.f32.mrb[0].mxu0
    %v1296 = vadd.f32 0.0, %v1295
    %v1297 = vpop.f32.mrb[0].mxu0
    %v1298 = vpop.f32.mrb[0].mxu0
    %v1299 = vadd.f32 0.0, %v1298
    %v1300 = vpop.f32.mrb[0].mxu0
    %1301 = vdwg.mxu0
    %v1302 = vpack.c.bf16 %v1243, %v1240
    %v1303 = vpack.c.bf16 %v1251, %v1248
    %v1304 = vpack.c.bf16 %v1259, %v1256
    %v1305 = vpack.c.bf16 %v1267, %v1264
    %v1306 = vpack.c.bf16 %v1275, %v1272
    %v1307 = vpack.c.bf16 %v1283, %v1280
    %v1308 = vpack.c.bf16 %v1291, %v1288
    %v1309 = vpack.c.bf16 %v1299, %v1296
    %v1310 = vld [vmem:[%s11] sm:$0x1]
    %v1312 = vlaneseq
    %v1313 = vshrl.u32 %v1312, 7
    %v1314 = vsub.s32 0, %v1313
    %v1315 = vrot.slane %v1310, %v1314
    %1317 = vmatprep.subr.bf16.mxu0 0
    %1318 = vmatpush1.bf16.msra.mxu0 %v1302
    %1319 = vmatprep.subr.bf16.mxu0 0
    %1320 = vmatpush1.bf16.msra.mxu0 %v1303
    %1321 = vmatprep.subr.bf16.mxu0 0
    %1322 = vmatpush1.bf16.msra.mxu0 %v1304
    %1323 = vmatprep.subr.bf16.mxu0 0
    %1324 = vmatpush1.bf16.msra.mxu0 %v1305
    %1325 = vmatprep.subr.bf16.mxu0 0
    %1326 = vmatpush1.bf16.msra.mxu0 %v1306
    %1327 = vmatprep.subr.bf16.mxu0 0
    %1328 = vmatpush1.bf16.msra.mxu0 %v1307
    %1329 = vmatprep.subr.bf16.mxu0 0
    %1330 = vmatpush1.bf16.msra.mxu0 %v1308
    %1331 = vmatprep.subr.bf16.mxu0 0
    %1332 = vmatpush1.bf16.msra.mxu0 %v1309
    %1333 = vmatprep.subr.bf16.mxu0 0
    %1334 = vmatpush1.bf16.msra.mxu0 0
    %1335 = vmatprep.subr.bf16.mxu0 0
    %1336 = vmatpush1.bf16.msra.mxu0 0
    %1337 = vmatprep.subr.bf16.mxu0 0
    %1338 = vmatpush1.bf16.msra.mxu0 0
    %1339 = vmatprep.subr.bf16.mxu0 0
    %1340 = vmatpush1.bf16.msra.mxu0 0
    %1341 = vmatprep.subr.bf16.mxu0 0
    %1342 = vmatpush1.bf16.msra.mxu0 0
    %1343 = vmatprep.subr.bf16.mxu0 0
    %1344 = vmatpush1.bf16.msra.mxu0 0
    %1345 = vmatprep.subr.bf16.mxu0 0
    %1346 = vmatpush1.bf16.msra.mxu0 0
    %1347 = vmatprep.subr.bf16.mxu0 0
    %1348 = vmatpush1.bf16.msra.mxu0 0
    %1349 = vmatprep.mubr.bf16.mxu0 0
    %1350 = vmatmul.mubr.bf16.gmra.mrb[0].mxu0 %v890
    %v1351 = vpop.f32.mrb[0].mxu0
    %v1352 = vadd.f32 %v1315, %v1351
    %v1353 = vpop.f32.mrb[0].mxu0
    %v1354 = vpop.f32.mrb[0].mxu0
    %v1355 = vadd.f32 %v1315, %v1354
    %v1356 = vpop.f32.mrb[0].mxu0
    %1357 = vmatprep.mubr.bf16.mxu0 0
    %1358 = vmatmul.mubr.bf16.gmra.mrb[0].mxu0 %v891
    %v1359 = vpop.f32.mrb[0].mxu0
    %v1360 = vadd.f32 %v1315, %v1359
    %v1361 = vpop.f32.mrb[0].mxu0
    %v1362 = vpop.f32.mrb[0].mxu0
    %v1363 = vadd.f32 %v1315, %v1362
    %v1364 = vpop.f32.mrb[0].mxu0
    %1365 = vmatprep.mubr.bf16.mxu0 0
    %1366 = vmatmul.mubr.bf16.gmra.mrb[0].mxu0 %v892
    %v1367 = vpop.f32.mrb[0].mxu0
    %v1368 = vadd.f32 %v1315, %v1367
    %v1369 = vpop.f32.mrb[0].mxu0
    %v1370 = vpop.f32.mrb[0].mxu0
    %v1371 = vadd.f32 %v1315, %v1370
    %v1372 = vpop.f32.mrb[0].mxu0
    %1373 = vmatprep.mubr.bf16.mxu0 0
    %1374 = vmatmul.mubr.bf16.gmra.mrb[0].mxu0 %v893
    %v1375 = vpop.f32.mrb[0].mxu0
    %v1376 = vadd.f32 %v1315, %v1375
    %v1377 = vpop.f32.mrb[0].mxu0
    %v1378 = vpop.f32.mrb[0].mxu0
    %v1379 = vadd.f32 %v1315, %v1378
    %v1380 = vpop.f32.mrb[0].mxu0
    %1381 = vmatprep.mubr.bf16.mxu0 0
    %1382 = vmatmul.mubr.bf16.gmra.mrb[0].mxu0 %v894
    %v1383 = vpop.f32.mrb[0].mxu0
    %v1384 = vadd.f32 %v1315, %v1383
    %v1385 = vpop.f32.mrb[0].mxu0
    %v1386 = vpop.f32.mrb[0].mxu0
    %v1387 = vadd.f32 %v1315, %v1386
    %v1388 = vpop.f32.mrb[0].mxu0
    %1389 = vmatprep.mubr.bf16.mxu0 0
    %1390 = vmatmul.mubr.bf16.gmra.mrb[0].mxu0 %v895
    %v1391 = vpop.f32.mrb[0].mxu0
    %v1392 = vadd.f32 %v1315, %v1391
    %v1393 = vpop.f32.mrb[0].mxu0
    %v1394 = vpop.f32.mrb[0].mxu0
    %v1395 = vadd.f32 %v1315, %v1394
    %v1396 = vpop.f32.mrb[0].mxu0
    %1397 = vmatprep.mubr.bf16.mxu0 0
    %1398 = vmatmul.mubr.bf16.gmra.mrb[0].mxu0 %v896
    %v1399 = vpop.f32.mrb[0].mxu0
    %v1400 = vadd.f32 %v1315, %v1399
    %v1401 = vpop.f32.mrb[0].mxu0
    %v1402 = vpop.f32.mrb[0].mxu0
    %v1403 = vadd.f32 %v1315, %v1402
    %v1404 = vpop.f32.mrb[0].mxu0
    %1405 = vmatprep.mubr.bf16.mxu0 0
    %1406 = vmatmul.mubr.bf16.gmra.mrb[0].mxu0 %v897
    %v1407 = vpop.f32.mrb[0].mxu0
    %v1408 = vadd.f32 %v1315, %v1407
    %v1409 = vpop.f32.mrb[0].mxu0
    %v1410 = vpop.f32.mrb[0].mxu0
    %v1411 = vadd.f32 %v1315, %v1410
    %v1412 = vpop.f32.mrb[0].mxu0
    %1413 = vdwg.mxu0
    %v1414 = vmul.f32 %v1352, %v202
    %v1415 = vmul.f32 %v1355, %v203
    %v1416 = vmul.f32 %v1360, %v204
    %v1417 = vmul.f32 %v1363, %v205
    %v1418 = vmul.f32 %v1368, %v206
    %v1419 = vmul.f32 %v1371, %v207
    %v1420 = vmul.f32 %v1376, %v208
    %v1421 = vmul.f32 %v1379, %v209
    %v1422 = vmul.f32 %v1384, %v210
    %v1423 = vmul.f32 %v1387, %v211
    %v1424 = vmul.f32 %v1392, %v212
    %v1425 = vmul.f32 %v1395, %v213
    %v1426 = vmul.f32 %v1400, %v214
    %v1427 = vmul.f32 %v1403, %v215
    %v1428 = vmul.f32 %v1408, %v216
    %v1429 = vmul.f32 %v1411, %v217
    %v1430 = vadd.f32 %v1414, %v1415
    %v1431 = vadd.f32 %v1430, %v1416
    %v1432 = vadd.f32 %v1431, %v1417
    %v1433 = vadd.f32 %v1432, %v1418
    %v1434 = vadd.f32 %v1433, %v1419
    %v1435 = vadd.f32 %v1434, %v1420
    %v1436 = vadd.f32 %v1435, %v1421
    %v1437 = vadd.f32 %v1436, %v1422
    %v1438 = vadd.f32 %v1437, %v1423
    %v1439 = vadd.f32 %v1438, %v1424
    %v1440 = vadd.f32 %v1439, %v1425
    %v1441 = vadd.f32 %v1440, %v1426
    %v1442 = vadd.f32 %v1441, %v1427
    %v1443 = vadd.f32 %v1442, %v1428
    %v1444 = vadd.f32 %v1443, %v1429
    %v1445 = vrot.slane %v1444, 4
    %v1446 = vadd.f32 %v1444, %v1445
    %v1447 = vrot.slane %v1446, 2
    %v1448 = vadd.f32 %v1446, %v1447
    %v1449 = vrot.slane %v1448, 1
    %v1450 = vadd.f32 %v1448, %v1449
    %v1451 = vmul.f32 %v1450, 0.015625
    %v1452 = vmul.f32 %v1414, %v1414
    %v1453 = vmul.f32 %v1415, %v1415
    %v1454 = vmul.f32 %v1416, %v1416
    %v1455 = vmul.f32 %v1417, %v1417
    %v1456 = vmul.f32 %v1418, %v1418
    %v1457 = vmul.f32 %v1419, %v1419
    %v1458 = vmul.f32 %v1420, %v1420
    %v1459 = vmul.f32 %v1421, %v1421
    %v1460 = vmul.f32 %v1422, %v1422
    %v1461 = vmul.f32 %v1423, %v1423
    %v1462 = vmul.f32 %v1424, %v1424
    %v1463 = vmul.f32 %v1425, %v1425
    %v1464 = vmul.f32 %v1426, %v1426
    %v1465 = vmul.f32 %v1427, %v1427
    %v1466 = vmul.f32 %v1428, %v1428
    %v1467 = vmul.f32 %v1429, %v1429
    %v1468 = vadd.f32 %v1452, %v1453
    %v1469 = vadd.f32 %v1468, %v1454
    %v1470 = vadd.f32 %v1469, %v1455
    %v1471 = vadd.f32 %v1470, %v1456
    %v1472 = vadd.f32 %v1471, %v1457
    %v1473 = vadd.f32 %v1472, %v1458
    %v1474 = vadd.f32 %v1473, %v1459
    %v1475 = vadd.f32 %v1474, %v1460
    %v1476 = vadd.f32 %v1475, %v1461
    %v1477 = vadd.f32 %v1476, %v1462
    %v1478 = vadd.f32 %v1477, %v1463
    %v1479 = vadd.f32 %v1478, %v1464
    %v1480 = vadd.f32 %v1479, %v1465
    %v1481 = vadd.f32 %v1480, %v1466
    %v1482 = vadd.f32 %v1481, %v1467
    %v1483 = vrot.slane %v1482, 4
    %v1484 = vadd.f32 %v1482, %v1483
    %v1485 = vrot.slane %v1484, 2
    %v1486 = vadd.f32 %v1484, %v1485
    %v1487 = vrot.slane %v1486, 1
    %v1488 = vadd.f32 %v1486, %v1487
    %v1489 = vmul.f32 %v1488, 0.015625
    %v1490 = vmul.f32 %v1451, %v1451
    %v1491 = vsub.f32 %v1489, %v1490
    %v1492 = vmax.f32 %v1491, 0.0
    %v1493 = vld [vmem:[%s12] sm:$0x1]
    %v1494 = vadd.f32 %v1492, 1e-05
    %v1495 = vrsqrt.pop %v1494
    %v1496 = vmul.f32 %v1493, %v1495
    %v1497 = vld [vmem:[%s13] sm:$0x1]
    %v1498 = vmul.f32 %v1451, %v1496
    %v1499 = vsub.f32 %v1497, %v1498
    %v1501 = vlaneseq
    %v1502 = vshrl.u32 %v1501, 7
    %v1503 = vsub.s32 0, %v1502
    %v1504 = vrot.slane %v1496, %v1503
    %v1506 = vmul.f32 %v1352, %v1504
    %v1507 = vmul.f32 %v1355, %v1504
    %v1508 = vmul.f32 %v1360, %v1504
    %v1509 = vmul.f32 %v1363, %v1504
    %v1510 = vmul.f32 %v1368, %v1504
    %v1511 = vmul.f32 %v1371, %v1504
    %v1512 = vmul.f32 %v1376, %v1504
    %v1513 = vmul.f32 %v1379, %v1504
    %v1514 = vmul.f32 %v1384, %v1504
    %v1515 = vmul.f32 %v1387, %v1504
    %v1516 = vmul.f32 %v1392, %v1504
    %v1517 = vmul.f32 %v1395, %v1504
    %v1518 = vmul.f32 %v1400, %v1504
    %v1519 = vmul.f32 %v1403, %v1504
    %v1520 = vmul.f32 %v1408, %v1504
    %v1521 = vmul.f32 %v1411, %v1504
    %v1523 = vlaneseq
    %v1524 = vshrl.u32 %v1523, 7
    %v1525 = vsub.s32 0, %v1524
    %v1526 = vrot.slane %v1499, %v1525
    %v1528 = vadd.f32 %v1506, %v1526
    %v1529 = vadd.f32 %v1507, %v1526
    %v1530 = vadd.f32 %v1508, %v1526
    %v1531 = vadd.f32 %v1509, %v1526
    %v1532 = vadd.f32 %v1510, %v1526
    %v1533 = vadd.f32 %v1511, %v1526
    %v1534 = vadd.f32 %v1512, %v1526
    %v1535 = vadd.f32 %v1513, %v1526
    %v1536 = vadd.f32 %v1514, %v1526
    %v1537 = vadd.f32 %v1515, %v1526
    %v1538 = vadd.f32 %v1516, %v1526
    %v1539 = vadd.f32 %v1517, %v1526
    %v1540 = vadd.f32 %v1518, %v1526
    %v1541 = vadd.f32 %v1519, %v1526
    %v1542 = vadd.f32 %v1520, %v1526
    %v1543 = vadd.f32 %v1521, %v1526
    %v1544 = vpack.c.bf16 %v1529, %v1528
    %v1545 = vpack.c.bf16 %v1531, %v1530
    %v1546 = vpack.c.bf16 %v1533, %v1532
    %v1547 = vpack.c.bf16 %v1535, %v1534
    %v1548 = vpack.c.bf16 %v1537, %v1536
    %v1549 = vpack.c.bf16 %v1539, %v1538
    %v1550 = vpack.c.bf16 %v1541, %v1540
    %v1551 = vpack.c.bf16 %v1543, %v1542
    %v1552 = vld [vmem:[#allocation13] sm:$0xf]
    %v1553 = vld [vmem:[#allocation13 + $0x4] sm:$0xf]
    %v1554 = vld [vmem:[#allocation13 + $0x8] sm:$0xf]
    %v1555 = vld [vmem:[#allocation13 + $0xc] sm:$0xf]
    %v1556 = vld [vmem:[#allocation13 + $0x10] sm:$0xf]
    %v1557 = vld [vmem:[#allocation13 + $0x14] sm:$0xf]
    %v1558 = vld [vmem:[#allocation13 + $0x18] sm:$0xf]
    %v1559 = vld [vmem:[#allocation13 + $0x1c] sm:$0xf]
    %v1560 = vld [vmem:[#allocation13 + $0x20] sm:$0xf]
    %v1561 = vld [vmem:[#allocation13 + $0x24] sm:$0xf]
    %v1562 = vld [vmem:[#allocation13 + $0x28] sm:$0xf]
    %v1563 = vld [vmem:[#allocation13 + $0x2c] sm:$0xf]
    %v1564 = vld [vmem:[#allocation13 + $0x30] sm:$0xf]
    %v1565 = vld [vmem:[#allocation13 + $0x34] sm:$0xf]
    %v1566 = vld [vmem:[#allocation13 + $0x38] sm:$0xf]
    %v1567 = vld [vmem:[#allocation13 + $0x3c] sm:$0xf]
    %v1568 = vld [vmem:[%s15] sm:$0x1]
    %v1570 = vlaneseq
    %v1571 = vshrl.u32 %v1570, 7
    %v1572 = vsub.s32 0, %v1571
    %v1573 = vrot.slane %v1568, %v1572
    %v1591 = vunpack.c.l.b16 %v1552
    %v1592 = vunpack.c.l.b16 %v1553
    %v1593 = vunpack.c.l.b16 %v1554
    %v1594 = vunpack.c.l.b16 %v1555
    %v1595 = vunpack.c.l.b16 %v1556
    %v1596 = vunpack.c.l.b16 %v1557
    %v1597 = vunpack.c.l.b16 %v1558
    %v1598 = vunpack.c.l.b16 %v1559
    %v1599 = vunpack.c.l.b16 %v1560
    %v1600 = vunpack.c.l.b16 %v1561
    %v1601 = vunpack.c.l.b16 %v1562
    %v1602 = vunpack.c.l.b16 %v1563
    %v1603 = vunpack.c.l.b16 %v1564
    %v1604 = vunpack.c.l.b16 %v1565
    %v1605 = vunpack.c.l.b16 %v1566
    %v1606 = vunpack.c.l.b16 %v1567
    %v1607 = vpack.c.b16 %v1592, %v1591
    %v1608 = vpack.c.b16 %v1594, %v1593
    %v1609 = vpack.c.b16 %v1596, %v1595
    %v1610 = vpack.c.b16 %v1598, %v1597
    %v1611 = vpack.c.b16 %v1600, %v1599
    %v1612 = vpack.c.b16 %v1602, %v1601
    %v1613 = vpack.c.b16 %v1604, %v1603
    %v1614 = vpack.c.b16 %v1606, %v1605
    %1623 = vmatprep.subr.bf16.mxu0 0
    %1624 = vmatpush1.bf16.msra.mxu0 %v1607
    %1625 = vmatprep.subr.bf16.mxu0 0
    %1626 = vmatpush1.bf16.msra.mxu0 %v1608
    %1627 = vmatprep.subr.bf16.mxu0 0
    %1628 = vmatpush1.bf16.msra.mxu0 %v1609
    %1629 = vmatprep.subr.bf16.mxu0 0
    %1630 = vmatpush1.bf16.msra.mxu0 %v1610
    %1631 = vmatprep.subr.bf16.mxu0 0
    %1632 = vmatpush1.bf16.msra.mxu0 %v1611
    %1633 = vmatprep.subr.bf16.mxu0 0
    %1634 = vmatpush1.bf16.msra.mxu0 %v1612
    %1635 = vmatprep.subr.bf16.mxu0 0
    %1636 = vmatpush1.bf16.msra.mxu0 %v1613
    %1637 = vmatprep.subr.bf16.mxu0 0
    %1638 = vmatpush1.bf16.msra.mxu0 %v1614
    %1639 = vmatprep.subr.bf16.mxu0 0
    %1640 = vmatpush1.bf16.msra.mxu0 0
    %1641 = vmatprep.subr.bf16.mxu0 0
    %1642 = vmatpush1.bf16.msra.mxu0 0
    %1643 = vmatprep.subr.bf16.mxu0 0
    %1644 = vmatpush1.bf16.msra.mxu0 0
    %1645 = vmatprep.subr.bf16.mxu0 0
    %1646 = vmatpush1.bf16.msra.mxu0 0
    %1647 = vmatprep.subr.bf16.mxu0 0
    %1648 = vmatpush1.bf16.msra.mxu0 0
    %1649 = vmatprep.subr.bf16.mxu0 0
    %1650 = vmatpush1.bf16.msra.mxu0 0
    %1651 = vmatprep.subr.bf16.mxu0 0
    %1652 = vmatpush1.bf16.msra.mxu0 0
    %1653 = vmatprep.subr.bf16.mxu0 0
    %1654 = vmatpush1.bf16.msra.mxu0 0
    %1655 = vmatprep.mubr.bf16.mxu0 0
    %1656 = vmatmul.mubr.bf16.gmra.mrb[0].mxu0 %v1544
    %v1657 = vpop.f32.mrb[0].mxu0
    %v1658 = vadd.f32 %v1573, %v1657
    %v1659 = vpop.f32.mrb[0].mxu0
    %v1660 = vpop.f32.mrb[0].mxu0
    %v1661 = vadd.f32 %v1573, %v1660
    %v1662 = vpop.f32.mrb[0].mxu0
    %1663 = vmatprep.mubr.bf16.mxu0 0
    %1664 = vmatmul.mubr.bf16.gmra.mrb[0].mxu0 %v1545
    %v1665 = vpop.f32.mrb[0].mxu0
    %v1666 = vadd.f32 %v1573, %v1665
    %v1667 = vpop.f32.mrb[0].mxu0
    %v1668 = vpop.f32.mrb[0].mxu0
    %v1669 = vadd.f32 %v1573, %v1668
    %v1670 = vpop.f32.mrb[0].mxu0
    %1671 = vmatprep.mubr.bf16.mxu0 0
    %1672 = vmatmul.mubr.bf16.gmra.mrb[0].mxu0 %v1546
    %v1673 = vpop.f32.mrb[0].mxu0
    %v1674 = vadd.f32 %v1573, %v1673
    %v1675 = vpop.f32.mrb[0].mxu0
    %v1676 = vpop.f32.mrb[0].mxu0
    %v1677 = vadd.f32 %v1573, %v1676
    %v1678 = vpop.f32.mrb[0].mxu0
    %1679 = vmatprep.mubr.bf16.mxu0 0
    %1680 = vmatmul.mubr.bf16.gmra.mrb[0].mxu0 %v1547
    %v1681 = vpop.f32.mrb[0].mxu0
    %v1682 = vadd.f32 %v1573, %v1681
    %v1683 = vpop.f32.mrb[0].mxu0
    %v1684 = vpop.f32.mrb[0].mxu0
    %v1685 = vadd.f32 %v1573, %v1684
    %v1686 = vpop.f32.mrb[0].mxu0
    %1687 = vmatprep.mubr.bf16.mxu0 0
    %1688 = vmatmul.mubr.bf16.gmra.mrb[0].mxu0 %v1548
    %v1689 = vpop.f32.mrb[0].mxu0
    %v1690 = vadd.f32 %v1573, %v1689
    %v1691 = vpop.f32.mrb[0].mxu0
    %v1692 = vpop.f32.mrb[0].mxu0
    %v1693 = vadd.f32 %v1573, %v1692
    %v1694 = vpop.f32.mrb[0].mxu0
    %1695 = vmatprep.mubr.bf16.mxu0 0
    %1696 = vmatmul.mubr.bf16.gmra.mrb[0].mxu0 %v1549
    %v1697 = vpop.f32.mrb[0].mxu0
    %v1698 = vadd.f32 %v1573, %v1697
    %v1699 = vpop.f32.mrb[0].mxu0
    %v1700 = vpop.f32.mrb[0].mxu0
    %v1701 = vadd.f32 %v1573, %v1700
    %v1702 = vpop.f32.mrb[0].mxu0
    %1703 = vmatprep.mubr.bf16.mxu0 0
    %1704 = vmatmul.mubr.bf16.gmra.mrb[0].mxu0 %v1550
    %v1705 = vpop.f32.mrb[0].mxu0
    %v1706 = vadd.f32 %v1573, %v1705
    %v1707 = vpop.f32.mrb[0].mxu0
    %v1708 = vpop.f32.mrb[0].mxu0
    %v1709 = vadd.f32 %v1573, %v1708
    %v1710 = vpop.f32.mrb[0].mxu0
    %1711 = vmatprep.mubr.bf16.mxu0 0
    %1712 = vmatmul.mubr.bf16.gmra.mrb[0].mxu0 %v1551
    %v1713 = vpop.f32.mrb[0].mxu0
    %v1714 = vadd.f32 %v1573, %v1713
    %v1715 = vpop.f32.mrb[0].mxu0
    %v1716 = vpop.f32.mrb[0].mxu0
    %v1717 = vadd.f32 %v1573, %v1716
    %v1718 = vpop.f32.mrb[0].mxu0
    %1719 = vdwg.mxu0
    %v1720 = vmul.f32 %v1658, 0.1
    %v1721 = vmul.f32 %v1661, 0.1
    %v1722 = vmul.f32 %v1666, 0.1
    %v1723 = vmul.f32 %v1669, 0.1
    %v1724 = vmul.f32 %v1674, 0.1
    %v1725 = vmul.f32 %v1677, 0.1
    %v1726 = vmul.f32 %v1682, 0.1
    %v1727 = vmul.f32 %v1685, 0.1
    %v1728 = vmul.f32 %v1690, 0.1
    %v1729 = vmul.f32 %v1693, 0.1
    %v1730 = vmul.f32 %v1698, 0.1
    %v1731 = vmul.f32 %v1701, 0.1
    %v1732 = vmul.f32 %v1706, 0.1
    %v1733 = vmul.f32 %v1709, 0.1
    %v1734 = vmul.f32 %v1714, 0.1
    %v1735 = vmul.f32 %v1717, 0.1
    %1736 = vst [vmem:[#allocation14] sm:$0xff] %v1720
    %1737 = vst [vmem:[#allocation14 + $0x8] sm:$0xff] %v1721
    %1738 = vst [vmem:[#allocation14 + $0x10] sm:$0xff] %v1722
    %1739 = vst [vmem:[#allocation14 + $0x18] sm:$0xff] %v1723
    %1740 = vst [vmem:[#allocation14 + $0x20] sm:$0xff] %v1724
    %1741 = vst [vmem:[#allocation14 + $0x28] sm:$0xff] %v1725
    %1742 = vst [vmem:[#allocation14 + $0x30] sm:$0xff] %v1726
    %1743 = vst [vmem:[#allocation14 + $0x38] sm:$0xff] %v1727
    %1744 = vst [vmem:[#allocation14 + $0x40] sm:$0xff] %v1728
    %1745 = vst [vmem:[#allocation14 + $0x48] sm:$0xff] %v1729
    %1746 = vst [vmem:[#allocation14 + $0x50] sm:$0xff] %v1730
    %1747 = vst [vmem:[#allocation14 + $0x58] sm:$0xff] %v1731
    %1748 = vst [vmem:[#allocation14 + $0x60] sm:$0xff] %v1732
    %1749 = vst [vmem:[#allocation14 + $0x68] sm:$0xff] %v1733
    %1750 = vst [vmem:[#allocation14 + $0x70] sm:$0xff] %v1734
    %1751 = vst [vmem:[#allocation14 + $0x78] sm:$0xff] %v1735
    %1752 = vst [vmem:[#allocation15] sm:$0xff] %v1528
    %1753 = vst [vmem:[#allocation15 + $0x8] sm:$0xff] %v1529
    %1754 = vst [vmem:[#allocation15 + $0x10] sm:$0xff] %v1530
    %1755 = vst [vmem:[#allocation15 + $0x18] sm:$0xff] %v1531
    %1756 = vst [vmem:[#allocation15 + $0x20] sm:$0xff] %v1532
    %1757 = vst [vmem:[#allocation15 + $0x28] sm:$0xff] %v1533
    %1758 = vst [vmem:[#allocation15 + $0x30] sm:$0xff] %v1534
    %1759 = vst [vmem:[#allocation15 + $0x38] sm:$0xff] %v1535
    %1760 = vst [vmem:[#allocation15 + $0x40] sm:$0xff] %v1536
    %1761 = vst [vmem:[#allocation15 + $0x48] sm:$0xff] %v1537
    %1762 = vst [vmem:[#allocation15 + $0x50] sm:$0xff] %v1538
    %1763 = vst [vmem:[#allocation15 + $0x58] sm:$0xff] %v1539
    %1764 = vst [vmem:[#allocation15 + $0x60] sm:$0xff] %v1540
    %1765 = vst [vmem:[#allocation15 + $0x68] sm:$0xff] %v1541
    %1766 = vst [vmem:[#allocation15 + $0x70] sm:$0xff] %v1542
    %1767 = vst [vmem:[#allocation15 + $0x78] sm:$0xff] %v1543
    // Predicated region
    $region94: #{tpu_custom_call.1} parent=1 // pred_check
      _
    $region95: #{tpu_custom_call.1} parent=1 // pred_check_branch
      %1769 = sbr.rel (0) target = $region97
    $region96: #{tpu_custom_call.1} parent=1 // pred_region
      %s1771 = ssub.s32 2048, 2048
      %1772 = vsyncadd [#allocation4], %s1771
      %s1773 = sshll.u32 [#allocation14], 4
      %s1774 = int_to_ptr.vmem [resolvable:$true] %s1773
      %1779 = dma.vmem_to_hbm [thread:$0]  %s1774, 2048, %s16, [#allocation4], 128, 128, 8
    $region97: #{tpu_custom_call.1} parent=1 // pred_fallthru
      _
    // Predicated region
    $region98: #{tpu_custom_call.1} parent=1 // pred_check
      _
    $region99: #{tpu_custom_call.1} parent=1 // pred_check_branch
      %1781 = sbr.rel (0) target = $region101
    $region100: #{tpu_custom_call.1} parent=1 // pred_region
      %s1783 = ssub.s32 2048, 2048
      %1784 = vsyncadd [#allocation16], %s1783
      %s1785 = sshll.u32 [#allocation15], 4
      %s1786 = int_to_ptr.vmem [resolvable:$true] %s1785
      %1791 = dma.vmem_to_hbm [thread:$0]  %s1786, 2048, %s17, [#allocation16], 128, 128, 8
    $region101: #{tpu_custom_call.1} parent=1 // pred_fallthru
      _
    // Predicated region
    $region102: #{tpu_custom_call.1} parent=1 // pred_check
      _
    $region103: #{tpu_custom_call.1} parent=1 // pred_check_branch
      %1793 = sbr.rel (0) target = $region105
    $region104: #{tpu_custom_call.1} parent=1 // pred_region
      %1794 = dma.done [#allocation4], 2048
    $region105: #{tpu_custom_call.1} parent=1 // pred_fallthru
      _
    // Predicated region
    $region106: #{tpu_custom_call.1} parent=1 // pred_check
      _
    $region107: #{tpu_custom_call.1} parent=1 // pred_check_branch
      %1796 = sbr.rel (0) target = $region109
    $region108: #{tpu_custom_call.1} parent=1 // pred_region
      %1797 = dma.done [#allocation16], 2048
    $region109: #{tpu_custom_call.1} parent=1 // pred_fallthru
      _
    %1798 = vsyncpa [#allocation3], 1
    %1799 = vsyncpa [#allocation6], 1
    %1800 = vsyncpa [#allocation9], 1
    %1801 = vsyncpa [#allocation12], 1
    %1802 = vsyncpa [#allocation4], 1
    %1803 = vsyncpa [#allocation16], 1

</llo_original>
